<compile_context>
chip_gen: v7x
topology: tpu7x:2x2x1
jax: 0.10.0
libtpu: 0.0.40
codegen_flags: <defaults>
</compile_context>

<pallas_src>
import math

import numpy as np
import jax
import jax.numpy as jnp
from jax.experimental import pallas as pl
from jax.experimental.pallas import tpu as pltpu


# --------------------------------------------------------------------------
# Host-side weight folding (tiny matrices, built once per call with numpy).
# Packing conventions:
#   x / out : (h4, w4, 16C), lane index = (ph*4 + pw)*C + ci   (ph,pw = mod-4)
#   d1 / u1 : (h4, w4,  4C), lane index = (a*2 + b)*C + ci     (a,b  = mod-2)
# --------------------------------------------------------------------------
def _build_down1_mat(w1):
    """(3,3,C,C) HWIO -> (64C,4C): 4 shifted 16-phase x planes -> 4-phase d1.
    Shift (block) order along K: (-1,-1), (-1,0), (0,-1), (0,0)."""
    w1 = np.asarray(w1, np.float32)
    c = w1.shape[2]
    mats = []
    for s_h in (-1, 0):
        for s_w in (-1, 0):
            A = np.zeros((16 * c, 4 * c), np.float32)
            for a in (0, 1):
                for b in (0, 1):
                    for kh in range(3):
                        for kw in range(3):
                            m_h, m_w = 2 * a + kh - 1, 2 * b + kw - 1
                            if m_h // 4 != s_h or m_w // 4 != s_w:
                                continue
                            p_h, p_w = m_h % 4, m_w % 4
                            A[(p_h * 4 + p_w) * c:(p_h * 4 + p_w + 1) * c,
                              (a * 2 + b) * c:(a * 2 + b + 1) * c] = w1[kh, kw]
            mats.append(A)
    return np.concatenate(mats, axis=0)


def _build_down2_mat(w2):
    """(3,3,C,C) -> (16C,C): 4 shifted 4-phase d1 planes -> d2."""
    w2 = np.asarray(w2, np.float32)
    c = w2.shape[2]
    mats = []
    for s_h in (-1, 0):
        for s_w in (-1, 0):
            A = np.zeros((4 * c, c), np.float32)
            for a in (0, 1):
                for b in (0, 1):
                    kh, kw = 2 * s_h + a + 1, 2 * s_w + b + 1
                    if 0 <= kh <= 2 and 0 <= kw <= 2:
                        A[(a * 2 + b) * c:(a * 2 + b + 1) * c, :] = w2[kh, kw]
            mats.append(A)
    return np.concatenate(mats, axis=0)


def _build_up1_mat(w3):
    """(3,3,C,4C) -> (9C,4C): 9 shifted d2 planes -> 4-phase-packed
    (pixel-shuffled) u1; shift order (-1..1)x(-1..1)."""
    w3 = np.asarray(w3, np.float32)
    c = w3.shape[2]
    perm = [ch * 4 + g for g in range(4) for ch in range(c)]
    mats = []
    for s_h in (-1, 0, 1):
        for s_w in (-1, 0, 1):
            mats.append(w3[s_h + 1, s_w + 1][:, perm])
    return np.concatenate(mats, axis=0)


def _build_up2_mat(w4):
    """(3,3,C,4C) -> (36C,16C): 9 shifted 4-phase u1r planes ->
    16-phase-packed (pixel-shuffled) u2."""
    w4 = np.asarray(w4, np.float32)
    c = w4.shape[2]
    mats = []
    for s_h in (-1, 0, 1):
        for s_w in (-1, 0, 1):
            A = np.zeros((4 * c, 16 * c), np.float32)
            for ap in (0, 1):
                for bp in (0, 1):
                    for ph in range(4):
                        for pw in range(4):
                            a, ga = ph // 2, ph % 2
                            b, gb = pw // 2, pw % 2
                            kh = 2 * s_h + ap - a + 1
                            kw = 2 * s_w + bp - b + 1
                            if not (0 <= kh <= 2 and 0 <= kw <= 2):
                                continue
                            cols = [co * 4 + ga * 2 + gb for co in range(c)]
                            A[(ap * 2 + bp) * c:(ap * 2 + bp + 1) * c,
                              (ph * 4 + pw) * c:(ph * 4 + pw + 1) * c] = (
                                  w4[kh, kw][:, cols])
            mats.append(A)
    return np.concatenate(mats, axis=0)


# --------------------------------------------------------------------------
# Kernel
# --------------------------------------------------------------------------
def _ublock_kernel(xp_ref, a1_ref, b1_ref, a2_ref, b2_ref, a3_ref, b3_ref,
                   a4_ref, b4_ref, out_ref, d1pad, d2pad, u1pad):
    """Fused UBlock forward for one image (phase-packed, lane-dense).

    xp_ref : (1, h4+1, w4+1, 16C)  input, 4x4 phase-packed, +1 zero halo
    a*/b*  : host-folded im2col weight matrices / (1, N) biases
    out_ref: (1, h4, w4, 16C)
    d1pad  : (h4+1, w4+1, 4C)  d1 (2x2 phase-packed), leading zero halo
    d2pad  : (h4+2, w4+2,  C)  d2, zero halo both sides
    u1pad  : (h4+2, w4+2, 4C)  u1r = PS(u1)+d1, zero halo both sides
    """
    _, h4p1, w4p1, c16 = xp_ref.shape
    h4, w4 = h4p1 - 1, w4p1 - 1
    c = c16 // 16
    c4 = 4 * c
    m = h4 * w4
    f32 = jnp.float32

    # Zero only the halo rows/cols; interiors are fully overwritten below.
    d1pad[0:1, :, :] = jnp.zeros((1, w4 + 1, c4), f32)
    d1pad[:, 0:1, :] = jnp.zeros((h4 + 1, 1, c4), f32)
    for ref, cc in ((d2pad, c), (u1pad, c4)):
        ref[0:1, :, :] = jnp.zeros((1, w4 + 2, cc), f32)
        ref[h4 + 1:h4 + 2, :, :] = jnp.zeros((1, w4 + 2, cc), f32)
        ref[:, 0:1, :] = jnp.zeros((h4 + 2, 1, cc), f32)
        ref[:, w4 + 1:w4 + 2, :] = jnp.zeros((h4 + 2, 1, cc), f32)

    def conv(patch, a_ref, b_ref):
        y = jnp.dot(patch, a_ref[...], preferred_element_type=f32) + b_ref[...]
        return jnp.maximum(y, 0.0)

    def im2col2(read):  # stride-2 stages: shifts {-1, 0} per axis
        taps = [read(sh, sw) for sh in (0, 1) for sw in (0, 1)]
        p = jnp.concatenate(taps, axis=-1)
        return p.reshape(m, p.shape[-1])

    def im2col3(read):  # stride-1 stages: shifts {-1, 0, +1} per axis
        taps = [read(sh, sw) for sh in (0, 1, 2) for sw in (0, 1, 2)]
        p = jnp.concatenate(taps, axis=-1)
        return p.reshape(m, p.shape[-1])

    # down1: one matmul (M=h4*w4, K=64C, N=4C) -> d1 (2x2 phase-packed)
    p1 = im2col2(lambda sh, sw: xp_ref[0, sh:sh + h4, sw:sw + w4, :])
    d1 = conv(p1, a1_ref, b1_ref)                          # (m, 4C)
    d1pad[1:, 1:, :] = d1.reshape(h4, w4, c4)

    # down2: one matmul (K=16C, N=C) -> d2
    p2 = im2col2(lambda sh, sw: d1pad[sh:sh + h4, sw:sw + w4, :])
    d2 = conv(p2, a2_ref, b2_ref)                          # (m, C)
    d2pad[1:1 + h4, 1:1 + w4, :] = d2.reshape(h4, w4, c)

    # up1 + pixel-shuffle + residual(d1): one matmul (K=9C, N=4C)
    p3 = im2col3(lambda sh, sw: d2pad[sh:sh + h4, sw:sw + w4, :])
    u1 = conv(p3, a3_ref, b3_ref) + d1                     # (m, 4C)
    u1pad[1:1 + h4, 1:1 + w4, :] = u1.reshape(h4, w4, c4)

    # up2 + pixel-shuffle + residual(x): one matmul (K=36C, N=16C)
    p4 = im2col3(lambda sh, sw: u1pad[sh:sh + h4, sw:sw + w4, :])
    u2 = conv(p4, a4_ref, b4_ref)                          # (m, 16C)
    out_ref[0] = u2.reshape(h4, w4, c16) + xp_ref[0, 1:, 1:, :]


# --------------------------------------------------------------------------
# Wrapper
# --------------------------------------------------------------------------
def _pack_input(x_nchw):
    n, c, h, w = x_nchw.shape
    h4, w4 = h // 4, w // 4
    xp = x_nchw.reshape(n, c, h4, 4, w4, 4).transpose(0, 2, 4, 3, 5, 1)
    return xp.reshape(n, h4, w4, 16 * c)


def _unpack_output(outp, c):
    n, h4, w4, _ = outp.shape
    o = outp.reshape(n, h4, w4, 4, 4, c).transpose(0, 5, 1, 3, 2, 4)
    return o.reshape(n, c, 4 * h4, 4 * w4)


def _padded_vmem_elems(shape):
    s = list(shape)
    s[-1] = -(-s[-1] // 128) * 128
    if len(s) >= 2:
        s[-2] = -(-s[-2] // 8) * 8
    out = 1
    for d in s:
        out *= d
    return out


def ublock_forward(x_nchw, params):
    """Exact UBlock forward. Input/output: NCHW float32 (PyTorch interface)."""
    n, c, h, w = x_nchw.shape
    assert h % 4 == 0 and w % 4 == 0, "H and W must be multiples of 4"
    h4, w4 = h // 4, w // 4
    c4, c16 = 4 * c, 16 * c

    # Boundary layout op: NCHW -> 4x4 phase-packed (lane-dense), +1 zero halo.
    xp = jnp.pad(_pack_input(x_nchw), ((0, 0), (1, 0), (1, 0), (0, 0)))

    (wd1, bd1), (wd2, bd2) = params["down1"], params["down2"]
    (wu1, bu1), (wu2, bu2) = params["up1"], params["up2"]

    a1 = jnp.asarray(_build_down1_mat(wd1))          # (64C, 4C)
    a2 = jnp.asarray(_build_down2_mat(wd2))          # (16C, C)
    a3 = jnp.asarray(_build_up1_mat(wu1))            # (9C, 4C)
    a4 = jnp.asarray(_build_up2_mat(wu2))            # (36C, 16C)
    b1p = jnp.asarray(np.tile(np.asarray(bd1, np.float32), 4).reshape(1, c4))
    b2p = jnp.asarray(np.asarray(bd2, np.float32).reshape(1, c))
    perm = [ch * 4 + g for g in range(4) for ch in range(c)]
    b3p = jnp.asarray(np.asarray(bu1, np.float32)[perm].reshape(1, c4))
    idx4 = [co * 4 + (ph % 2) * 2 + (pw % 2)
            for ph in range(4) for pw in range(4) for co in range(c)]
    b4p = jnp.asarray(np.asarray(bu2, np.float32)[idx4].reshape(1, c16))

    # VMEM budget: whole image resident per grid step.
    f32b = 4
    act = f32b * (2 * _padded_vmem_elems((h4 + 1, w4 + 1, c16))    # in (dbl)
                  + 2 * _padded_vmem_elems((h4, w4, c16))          # out (dbl)
                  + _padded_vmem_elems((h4 + 1, w4 + 1, c4))       # d1pad
                  + _padded_vmem_elems((h4 + 2, w4 + 2, c))        # d2pad
                  + _padded_vmem_elems((h4 + 2, w4 + 2, c4))       # u1pad
                  + 4 * _padded_vmem_elems((h4 * w4, 64 * c)))     # im2col tmp
    wts = f32b * 2 * sum(int(np.prod(s)) for s in
                         ((64 * c, c4), (16 * c, c), (9 * c, c4),
                          (36 * c, c16), (1, c4), (1, c), (1, c4), (1, c16)))
    need = act + wts
    # TODO(synk): H-tile grid axis + bf16 scratch for images too large to stay
    # whole-image resident in VMEM (v7x: 64 MiB/TC); fail loudly for now.
    assert need < 48 * 1024 * 1024, f"UBlock VMEM plan too large: {need} B"
    vmem_limit = int(min(96 * 1024 * 1024, max(8 * 1024 * 1024, 2 * need)))

    def full(shape):
        return pl.BlockSpec(shape, lambda i: tuple(0 for _ in shape))

    outp = pl.pallas_call(
        _ublock_kernel,
        out_shape=jax.ShapeDtypeStruct((n, h4, w4, c16), jnp.float32),
        grid=(n,),
        in_specs=[
            pl.BlockSpec((1, h4 + 1, w4 + 1, c16), lambda i: (i, 0, 0, 0)),
            full(a1.shape), full(b1p.shape),
            full(a2.shape), full(b2p.shape),
            full(a3.shape), full(b3p.shape),
            full(a4.shape), full(b4p.shape),
        ],
        out_specs=pl.BlockSpec((1, h4, w4, c16), lambda i: (i, 0, 0, 0)),
        scratch_shapes=[
            pltpu.VMEM((h4 + 1, w4 + 1, c4), jnp.float32),   # d1 (phase-packed)
            pltpu.VMEM((h4 + 2, w4 + 2, c), jnp.float32),    # d2
            pltpu.VMEM((h4 + 2, w4 + 2, c4), jnp.float32),   # u1 + d1 residual
        ],
        compiler_params=pltpu.CompilerParams(
            dimension_semantics=("parallel",),
            vmem_limit_bytes=vmem_limit),
    )(xp, a1, b1p, a2, b2p, a3, b3p, a4, b4p)

    return _unpack_output(outp, c)


# ---------------- pure-JAX reference (correctness check only) ---------------
def _pixel_shuffle_nhwc(x, r=2):
    n, h, w, c4 = x.shape
    c = c4 // (r * r)
    x = x.reshape(n, h, w, c, r, r).transpose(0, 1, 4, 2, 5, 3)
    return x.reshape(n, h * r, w * r, c)


def _ref_conv(x, w, b, stride):
    y = jax.lax.conv_general_dilated(
        x, w, window_strides=(stride, stride), padding=((1, 1), (1, 1)),
        dimension_numbers=("NHWC", "HWIO", "NHWC"),
        precision=jax.lax.Precision.HIGHEST)
    return jax.nn.relu(y + b)


def ublock_ref(x_nchw, params):
    x = jnp.transpose(x_nchw, (0, 2, 3, 1))
    d1 = _ref_conv(x, *params["down1"], 2)
    d2 = _ref_conv(d1, *params["down2"], 2)
    u1 = _pixel_shuffle_nhwc(_ref_conv(d2, *params["up1"], 1)) + d1
    u2 = _pixel_shuffle_nhwc(_ref_conv(u1, *params["up2"], 1)) + x
    return jnp.transpose(u2, (0, 3, 1, 2))


if __name__ == "__main__":
    n_feats = 4
    key = jax.random.PRNGKey(0)
    k_x, *k_p = jax.random.split(key, 9)

    def init_conv(kw_, kb_, cin, cout, ksz=3):
        bound = 1.0 / math.sqrt(cin * ksz * ksz)
        wt = jax.random.uniform(kw_, (ksz, ksz, cin, cout), jnp.float32,
                                -bound, bound)
        bs = jax.random.uniform(kb_, (cout,), jnp.float32, -bound, bound)
        return wt, bs

    params = {
        "down1": init_conv(k_p[0], k_p[1], n_feats, n_feats),
        "down2": init_conv(k_p[2], k_p[3], n_feats, n_feats),
        "up1":   init_conv(k_p[4], k_p[5], n_feats, 4 * n_feats),
        "up2":   init_conv(k_p[6], k_p[7], n_feats, 4 * n_feats),
    }

    x = jax.random.normal(k_x, (2, n_feats, 16, 16), jnp.float32)  # NCHW

    out = jax.block_until_ready(ublock_forward(x, params))
    ref = jax.block_until_ready(ublock_ref(x, params))

    assert out.shape == x.shape, (out.shape, x.shape)
    err = float(jnp.max(jnp.abs(out - ref)))
    assert jnp.allclose(out, ref, atol=1e-3, rtol=1e-3), err
    print("KERNEL_OK")
</pallas_src>

<mosaic_0001>
module attributes {stable_mosaic.version = 11 : i64} {
  func.func @_ublock_kernel(%arg0: i32, %arg1: memref<1x5x5x64xf32, #tpu.memory_space<vmem>>, %arg2: memref<256x16xf32, #tpu.memory_space<vmem>>, %arg3: memref<1x16xf32, #tpu.memory_space<vmem>>, %arg4: memref<64x4xf32, #tpu.memory_space<vmem>>, %arg5: memref<1x4xf32, #tpu.memory_space<vmem>>, %arg6: memref<36x16xf32, #tpu.memory_space<vmem>>, %arg7: memref<1x16xf32, #tpu.memory_space<vmem>>, %arg8: memref<144x64xf32, #tpu.memory_space<vmem>>, %arg9: memref<1x64xf32, #tpu.memory_space<vmem>>, %arg10: memref<1x4x4x64xf32, #tpu.memory_space<vmem>>, %arg11: memref<5x5x16xf32, #tpu.memory_space<vmem>>, %arg12: memref<6x6x4xf32, #tpu.memory_space<vmem>>, %arg13: memref<6x6x16xf32, #tpu.memory_space<vmem>>) attributes {dimension_semantics = [#tpu.dimension_semantics<parallel>], iteration_bounds = array<i64: 2>, scalar_prefetch = 0 : i64, scratch_operands = 3 : i64, tpu.core_type = #tpu.core_type<tc>, window_params = [{transform_indices = @transform_0, window_bounds = array<i64: 1, 5, 5, 64>}, {pipeline_mode = #tpu.pipeline_mode<synchronous>, transform_indices = @transform_1, window_bounds = array<i64: 256, 16>}, {pipeline_mode = #tpu.pipeline_mode<synchronous>, transform_indices = @transform_2, window_bounds = array<i64: 1, 16>}, {pipeline_mode = #tpu.pipeline_mode<synchronous>, transform_indices = @transform_3, window_bounds = array<i64: 64, 4>}, {pipeline_mode = #tpu.pipeline_mode<synchronous>, transform_indices = @transform_4, window_bounds = array<i64: 1, 4>}, {pipeline_mode = #tpu.pipeline_mode<synchronous>, transform_indices = @transform_5, window_bounds = array<i64: 36, 16>}, {pipeline_mode = #tpu.pipeline_mode<synchronous>, transform_indices = @transform_6, window_bounds = array<i64: 1, 16>}, {pipeline_mode = #tpu.pipeline_mode<synchronous>, transform_indices = @transform_7, window_bounds = array<i64: 144, 64>}, {pipeline_mode = #tpu.pipeline_mode<synchronous>, transform_indices = @transform_8, window_bounds = array<i64: 1, 64>}, {transform_indices = @transform_9, window_bounds = array<i64: 1, 4, 4, 64>}]} {
    %cst = arith.constant 0.000000e+00 : f32
    %0 = vector.broadcast %cst : f32 to vector<1x5x16xf32>
    %c0 = arith.constant 0 : index
    %c0_0 = arith.constant 0 : index
    %c0_1 = arith.constant 0 : index
    %1 = vector.load %arg11[%c0, %c0_0, %c0_1] : memref<5x5x16xf32, #tpu.memory_space<vmem>>, vector<1x5x16xf32>
    tpu.vector_store %arg11[%c0, %c0_0, %c0_1], %0 {strides = array<i32>} : memref<5x5x16xf32, #tpu.memory_space<vmem>>, vector<1x5x16xf32>,
    %cst_2 = arith.constant 0.000000e+00 : f32
    %2 = vector.broadcast %cst_2 : f32 to vector<5x1x16xf32>
    %c0_3 = arith.constant 0 : index
    %c0_4 = arith.constant 0 : index
    %c0_5 = arith.constant 0 : index
    %3 = vector.load %arg11[%c0_3, %c0_4, %c0_5] : memref<5x5x16xf32, #tpu.memory_space<vmem>>, vector<5x1x16xf32>
    tpu.vector_store %arg11[%c0_3, %c0_4, %c0_5], %2 {strides = array<i32>} : memref<5x5x16xf32, #tpu.memory_space<vmem>>, vector<5x1x16xf32>,
    %cst_6 = arith.constant 0.000000e+00 : f32
    %4 = vector.broadcast %cst_6 : f32 to vector<1x6x4xf32>
    %c0_7 = arith.constant 0 : index
    %c0_8 = arith.constant 0 : index
    %c0_9 = arith.constant 0 : index
    %5 = vector.load %arg12[%c0_7, %c0_8, %c0_9] : memref<6x6x4xf32, #tpu.memory_space<vmem>>, vector<1x6x4xf32>
    tpu.vector_store %arg12[%c0_7, %c0_8, %c0_9], %4 {strides = array<i32>} : memref<6x6x4xf32, #tpu.memory_space<vmem>>, vector<1x6x4xf32>,
    %cst_10 = arith.constant 0.000000e+00 : f32
    %6 = vector.broadcast %cst_10 : f32 to vector<1x6x4xf32>
    %c5 = arith.constant 5 : index
    %c0_11 = arith.constant 0 : index
    %c0_12 = arith.constant 0 : index
    %7 = vector.load %arg12[%c5, %c0_11, %c0_12] : memref<6x6x4xf32, #tpu.memory_space<vmem>>, vector<1x6x4xf32>
    tpu.vector_store %arg12[%c5, %c0_11, %c0_12], %6 {strides = array<i32>} : memref<6x6x4xf32, #tpu.memory_space<vmem>>, vector<1x6x4xf32>,
    %cst_13 = arith.constant 0.000000e+00 : f32
    %8 = vector.broadcast %cst_13 : f32 to vector<6x1x4xf32>
    %c0_14 = arith.constant 0 : index
    %c0_15 = arith.constant 0 : index
    %c0_16 = arith.constant 0 : index
    %9 = vector.load %arg12[%c0_14, %c0_15, %c0_16] : memref<6x6x4xf32, #tpu.memory_space<vmem>>, vector<6x1x4xf32>
    tpu.vector_store %arg12[%c0_14, %c0_15, %c0_16], %8 {strides = array<i32>} : memref<6x6x4xf32, #tpu.memory_space<vmem>>, vector<6x1x4xf32>,
    %cst_17 = arith.constant 0.000000e+00 : f32
    %10 = vector.broadcast %cst_17 : f32 to vector<6x1x4xf32>
    %c0_18 = arith.constant 0 : index
    %c5_19 = arith.constant 5 : index
    %c0_20 = arith.constant 0 : index
    %11 = vector.load %arg12[%c0_18, %c5_19, %c0_20] : memref<6x6x4xf32, #tpu.memory_space<vmem>>, vector<6x1x4xf32>
    tpu.vector_store %arg12[%c0_18, %c5_19, %c0_20], %10 {strides = array<i32>} : memref<6x6x4xf32, #tpu.memory_space<vmem>>, vector<6x1x4xf32>,
    %cst_21 = arith.constant 0.000000e+00 : f32
    %12 = vector.broadcast %cst_21 : f32 to vector<1x6x16xf32>
    %c0_22 = arith.constant 0 : index
    %c0_23 = arith.constant 0 : index
    %c0_24 = arith.constant 0 : index
    %13 = vector.load %arg13[%c0_22, %c0_23, %c0_24] : memref<6x6x16xf32, #tpu.memory_space<vmem>>, vector<1x6x16xf32>
    tpu.vector_store %arg13[%c0_22, %c0_23, %c0_24], %12 {strides = array<i32>} : memref<6x6x16xf32, #tpu.memory_space<vmem>>, vector<1x6x16xf32>,
    %cst_25 = arith.constant 0.000000e+00 : f32
    %14 = vector.broadcast %cst_25 : f32 to vector<1x6x16xf32>
    %c5_26 = arith.constant 5 : index
    %c0_27 = arith.constant 0 : index
    %c0_28 = arith.constant 0 : index
    %15 = vector.load %arg13[%c5_26, %c0_27, %c0_28] : memref<6x6x16xf32, #tpu.memory_space<vmem>>, vector<1x6x16xf32>
    tpu.vector_store %arg13[%c5_26, %c0_27, %c0_28], %14 {strides = array<i32>} : memref<6x6x16xf32, #tpu.memory_space<vmem>>, vector<1x6x16xf32>,
    %cst_29 = arith.constant 0.000000e+00 : f32
    %16 = vector.broadcast %cst_29 : f32 to vector<6x1x16xf32>
    %c0_30 = arith.constant 0 : index
    %c0_31 = arith.constant 0 : index
    %c0_32 = arith.constant 0 : index
    %17 = vector.load %arg13[%c0_30, %c0_31, %c0_32] : memref<6x6x16xf32, #tpu.memory_space<vmem>>, vector<6x1x16xf32>
    tpu.vector_store %arg13[%c0_30, %c0_31, %c0_32], %16 {strides = array<i32>} : memref<6x6x16xf32, #tpu.memory_space<vmem>>, vector<6x1x16xf32>,
    %cst_33 = arith.constant 0.000000e+00 : f32
    %18 = vector.broadcast %cst_33 : f32 to vector<6x1x16xf32>
    %c0_34 = arith.constant 0 : index
    %c5_35 = arith.constant 5 : index
    %c0_36 = arith.constant 0 : index
    %19 = vector.load %arg13[%c0_34, %c5_35, %c0_36] : memref<6x6x16xf32, #tpu.memory_space<vmem>>, vector<6x1x16xf32>
    tpu.vector_store %arg13[%c0_34, %c5_35, %c0_36], %18 {strides = array<i32>} : memref<6x6x16xf32, #tpu.memory_space<vmem>>, vector<6x1x16xf32>,
    %c0_37 = arith.constant 0 : index
    %c0_38 = arith.constant 0 : index
    %c0_39 = arith.constant 0 : index
    %c0_40 = arith.constant 0 : index
    %20 = vector.load %arg1[%c0_37, %c0_38, %c0_39, %c0_40] : memref<1x5x5x64xf32, #tpu.memory_space<vmem>>, vector<1x4x4x64xf32>
    %21 = vector.shape_cast %20 : vector<1x4x4x64xf32> to vector<4x4x64xf32>
    %c0_41 = arith.constant 0 : index
    %c0_42 = arith.constant 0 : index
    %c1 = arith.constant 1 : index
    %c0_43 = arith.constant 0 : index
    %22 = vector.load %arg1[%c0_41, %c0_42, %c1, %c0_43] : memref<1x5x5x64xf32, #tpu.memory_space<vmem>>, vector<1x4x4x64xf32>
    %23 = vector.shape_cast %22 : vector<1x4x4x64xf32> to vector<4x4x64xf32>
    %c0_44 = arith.constant 0 : index
    %c1_45 = arith.constant 1 : index
    %c0_46 = arith.constant 0 : index
    %c0_47 = arith.constant 0 : index
    %24 = vector.load %arg1[%c0_44, %c1_45, %c0_46, %c0_47] : memref<1x5x5x64xf32, #tpu.memory_space<vmem>>, vector<1x4x4x64xf32>
    %25 = vector.shape_cast %24 : vector<1x4x4x64xf32> to vector<4x4x64xf32>
    %c0_48 = arith.constant 0 : index
    %c1_49 = arith.constant 1 : index
    %c1_50 = arith.constant 1 : index
    %c0_51 = arith.constant 0 : index
    %26 = vector.load %arg1[%c0_48, %c1_49, %c1_50, %c0_51] : memref<1x5x5x64xf32, #tpu.memory_space<vmem>>, vector<1x4x4x64xf32>
    %27 = vector.shape_cast %26 : vector<1x4x4x64xf32> to vector<4x4x64xf32>
    %28 = tpu.concatenate %21, %23, %25, %27 in 2 : vector<4x4x64xf32>, vector<4x4x64xf32>, vector<4x4x64xf32>, vector<4x4x64xf32> -> vector<4x4x256xf32>
    %29 = vector.shape_cast %28 : vector<4x4x256xf32> to vector<16x256xf32>
    %c0_52 = arith.constant 0 : index
    %c0_53 = arith.constant 0 : index
    %30 = vector.load %arg2[%c0_52, %c0_53] : memref<256x16xf32, #tpu.memory_space<vmem>>, vector<256x16xf32>
    %cst_54 = arith.constant dense<0.000000e+00> : vector<16x16xf32>
    %31 = tpu.matmul %29, %30, %cst_54 {dimension_numbers = #tpu.dot_dimension_numbers<[1], [0], [0], [1], [0, 0, 1, 1], [], []>} : vector<16x256xf32>, vector<256x16xf32>, vector<16x16xf32> -> vector<16x16xf32>
    %c0_55 = arith.constant 0 : index
    %c0_56 = arith.constant 0 : index
    %32 = vector.load %arg3[%c0_55, %c0_56] : memref<1x16xf32, #tpu.memory_space<vmem>>, vector<1x16xf32>
    %33 = vector.broadcast %32 : vector<1x16xf32> to vector<16x16xf32>
    %34 = arith.addf %31, %33 : vector<16x16xf32>
    %cst_57 = arith.constant 0.000000e+00 : f32
    %35 = vector.broadcast %cst_57 : f32 to vector<16x16xf32>
    %36 = arith.maximumf %34, %35 : vector<16x16xf32>
    %37 = vector.shape_cast %36 : vector<16x16xf32> to vector<4x4x16xf32>
    %c1_58 = arith.constant 1 : index
    %c1_59 = arith.constant 1 : index
    %c0_60 = arith.constant 0 : index
    %38 = vector.load %arg11[%c1_58, %c1_59, %c0_60] : memref<5x5x16xf32, #tpu.memory_space<vmem>>, vector<4x4x16xf32>
    tpu.vector_store %arg11[%c1_58, %c1_59, %c0_60], %37 {strides = array<i32>} : memref<5x5x16xf32, #tpu.memory_space<vmem>>, vector<4x4x16xf32>,
    %c0_61 = arith.constant 0 : index
    %c0_62 = arith.constant 0 : index
    %c0_63 = arith.constant 0 : index
    %39 = vector.load %arg11[%c0_61, %c0_62, %c0_63] : memref<5x5x16xf32, #tpu.memory_space<vmem>>, vector<4x4x16xf32>
    %c0_64 = arith.constant 0 : index
    %c1_65 = arith.constant 1 : index
    %c0_66 = arith.constant 0 : index
    %40 = vector.load %arg11[%c0_64, %c1_65, %c0_66] : memref<5x5x16xf32, #tpu.memory_space<vmem>>, vector<4x4x16xf32>
    %c1_67 = arith.constant 1 : index
    %c0_68 = arith.constant 0 : index
    %c0_69 = arith.constant 0 : index
    %41 = vector.load %arg11[%c1_67, %c0_68, %c0_69] : memref<5x5x16xf32, #tpu.memory_space<vmem>>, vector<4x4x16xf32>
    %c1_70 = arith.constant 1 : index
    %c1_71 = arith.constant 1 : index
    %c0_72 = arith.constant 0 : index
    %42 = vector.load %arg11[%c1_70, %c1_71, %c0_72] : memref<5x5x16xf32, #tpu.memory_space<vmem>>, vector<4x4x16xf32>
    %43 = tpu.concatenate %39, %40, %41, %42 in 2 : vector<4x4x16xf32>, vector<4x4x16xf32>, vector<4x4x16xf32>, vector<4x4x16xf32> -> vector<4x4x64xf32>
    %44 = vector.shape_cast %43 : vector<4x4x64xf32> to vector<16x64xf32>
    %c0_73 = arith.constant 0 : index
    %c0_74 = arith.constant 0 : index
    %45 = vector.load %arg4[%c0_73, %c0_74] : memref<64x4xf32, #tpu.memory_space<vmem>>, vector<64x4xf32>
    %cst_75 = arith.constant dense<0.000000e+00> : vector<16x4xf32>
    %46 = tpu.matmul %44, %45, %cst_75 {dimension_numbers = #tpu.dot_dimension_numbers<[1], [0], [0], [1], [0, 0, 1, 1], [], []>} : vector<16x64xf32>, vector<64x4xf32>, vector<16x4xf32> -> vector<16x4xf32>
    %c0_76 = arith.constant 0 : index
    %c0_77 = arith.constant 0 : index
    %47 = vector.load %arg5[%c0_76, %c0_77] : memref<1x4xf32, #tpu.memory_space<vmem>>, vector<1x4xf32>
    %48 = vector.broadcast %47 : vector<1x4xf32> to vector<16x4xf32>
    %49 = arith.addf %46, %48 : vector<16x4xf32>
    %cst_78 = arith.constant 0.000000e+00 : f32
    %50 = vector.broadcast %cst_78 : f32 to vector<16x4xf32>
    %51 = arith.maximumf %49, %50 : vector<16x4xf32>
    %52 = vector.shape_cast %51 : vector<16x4xf32> to vector<4x4x4xf32>
    %c1_79 = arith.constant 1 : index
    %c1_80 = arith.constant 1 : index
    %c0_81 = arith.constant 0 : index
    %53 = vector.load %arg12[%c1_79, %c1_80, %c0_81] : memref<6x6x4xf32, #tpu.memory_space<vmem>>, vector<4x4x4xf32>
    tpu.vector_store %arg12[%c1_79, %c1_80, %c0_81], %52 {strides = array<i32>} : memref<6x6x4xf32, #tpu.memory_space<vmem>>, vector<4x4x4xf32>,
    %c0_82 = arith.constant 0 : index
    %c0_83 = arith.constant 0 : index
    %c0_84 = arith.constant 0 : index
    %54 = vector.load %arg12[%c0_82, %c0_83, %c0_84] : memref<6x6x4xf32, #tpu.memory_space<vmem>>, vector<4x4x4xf32>
    %c0_85 = arith.constant 0 : index
    %c1_86 = arith.constant 1 : index
    %c0_87 = arith.constant 0 : index
    %55 = vector.load %arg12[%c0_85, %c1_86, %c0_87] : memref<6x6x4xf32, #tpu.memory_space<vmem>>, vector<4x4x4xf32>
    %c0_88 = arith.constant 0 : index
    %c2 = arith.constant 2 : index
    %c0_89 = arith.constant 0 : index
    %56 = vector.load %arg12[%c0_88, %c2, %c0_89] : memref<6x6x4xf32, #tpu.memory_space<vmem>>, vector<4x4x4xf32>
    %c1_90 = arith.constant 1 : index
    %c0_91 = arith.constant 0 : index
    %c0_92 = arith.constant 0 : index
    %57 = vector.load %arg12[%c1_90, %c0_91, %c0_92] : memref<6x6x4xf32, #tpu.memory_space<vmem>>, vector<4x4x4xf32>
    %c1_93 = arith.constant 1 : index
    %c1_94 = arith.constant 1 : index
    %c0_95 = arith.constant 0 : index
    %58 = vector.load %arg12[%c1_93, %c1_94, %c0_95] : memref<6x6x4xf32, #tpu.memory_space<vmem>>, vector<4x4x4xf32>
    %c1_96 = arith.constant 1 : index
    %c2_97 = arith.constant 2 : index
    %c0_98 = arith.constant 0 : index
    %59 = vector.load %arg12[%c1_96, %c2_97, %c0_98] : memref<6x6x4xf32, #tpu.memory_space<vmem>>, vector<4x4x4xf32>
    %c2_99 = arith.constant 2 : index
    %c0_100 = arith.constant 0 : index
    %c0_101 = arith.constant 0 : index
    %60 = vector.load %arg12[%c2_99, %c0_100, %c0_101] : memref<6x6x4xf32, #tpu.memory_space<vmem>>, vector<4x4x4xf32>
    %c2_102 = arith.constant 2 : index
    %c1_103 = arith.constant 1 : index
    %c0_104 = arith.constant 0 : index
    %61 = vector.load %arg12[%c2_102, %c1_103, %c0_104] : memref<6x6x4xf32, #tpu.memory_space<vmem>>, vector<4x4x4xf32>
    %c2_105 = arith.constant 2 : index
    %c2_106 = arith.constant 2 : index
    %c0_107 = arith.constant 0 : index
    %62 = vector.load %arg12[%c2_105, %c2_106, %c0_107] : memref<6x6x4xf32, #tpu.memory_space<vmem>>, vector<4x4x4xf32>
    %63 = tpu.concatenate %54, %55, %56, %57, %58, %59, %60, %61, %62 in 2 : vector<4x4x4xf32>, vector<4x4x4xf32>, vector<4x4x4xf32>, vector<4x4x4xf32>, vector<4x4x4xf32>, vector<4x4x4xf32>, vector<4x4x4xf32>, vector<4x4x4xf32>, vector<4x4x4xf32> -> vector<4x4x36xf32>
    %64 = vector.shape_cast %63 : vector<4x4x36xf32> to vector<16x36xf32>
    %c0_108 = arith.constant 0 : index
    %c0_109 = arith.constant 0 : index
    %65 = vector.load %arg6[%c0_108, %c0_109] : memref<36x16xf32, #tpu.memory_space<vmem>>, vector<36x16xf32>
    %cst_110 = arith.constant dense<0.000000e+00> : vector<16x16xf32>
    %66 = tpu.matmul %64, %65, %cst_110 {dimension_numbers = #tpu.dot_dimension_numbers<[1], [0], [0], [1], [0, 0, 1, 1], [], []>} : vector<16x36xf32>, vector<36x16xf32>, vector<16x16xf32> -> vector<16x16xf32>
    %c0_111 = arith.constant 0 : index
    %c0_112 = arith.constant 0 : index
    %67 = vector.load %arg7[%c0_111, %c0_112] : memref<1x16xf32, #tpu.memory_space<vmem>>, vector<1x16xf32>
    %68 = vector.broadcast %67 : vector<1x16xf32> to vector<16x16xf32>
    %69 = arith.addf %66, %68 : vector<16x16xf32>
    %cst_113 = arith.constant 0.000000e+00 : f32
    %70 = vector.broadcast %cst_113 : f32 to vector<16x16xf32>
    %71 = arith.maximumf %69, %70 : vector<16x16xf32>
    %72 = arith.addf %71, %36 : vector<16x16xf32>
    %73 = vector.shape_cast %72 : vector<16x16xf32> to vector<4x4x16xf32>
    %c1_114 = arith.constant 1 : index
    %c1_115 = arith.constant 1 : index
    %c0_116 = arith.constant 0 : index
    %74 = vector.load %arg13[%c1_114, %c1_115, %c0_116] : memref<6x6x16xf32, #tpu.memory_space<vmem>>, vector<4x4x16xf32>
    tpu.vector_store %arg13[%c1_114, %c1_115, %c0_116], %73 {strides = array<i32>} : memref<6x6x16xf32, #tpu.memory_space<vmem>>, vector<4x4x16xf32>,
    %c0_117 = arith.constant 0 : index
    %c0_118 = arith.constant 0 : index
    %c0_119 = arith.constant 0 : index
    %75 = vector.load %arg13[%c0_117, %c0_118, %c0_119] : memref<6x6x16xf32, #tpu.memory_space<vmem>>, vector<4x4x16xf32>
    %c0_120 = arith.constant 0 : index
    %c1_121 = arith.constant 1 : index
    %c0_122 = arith.constant 0 : index
    %76 = vector.load %arg13[%c0_120, %c1_121, %c0_122] : memref<6x6x16xf32, #tpu.memory_space<vmem>>, vector<4x4x16xf32>
    %c0_123 = arith.constant 0 : index
    %c2_124 = arith.constant 2 : index
    %c0_125 = arith.constant 0 : index
    %77 = vector.load %arg13[%c0_123, %c2_124, %c0_125] : memref<6x6x16xf32, #tpu.memory_space<vmem>>, vector<4x4x16xf32>
    %c1_126 = arith.constant 1 : index
    %c0_127 = arith.constant 0 : index
    %c0_128 = arith.constant 0 : index
    %78 = vector.load %arg13[%c1_126, %c0_127, %c0_128] : memref<6x6x16xf32, #tpu.memory_space<vmem>>, vector<4x4x16xf32>
    %c1_129 = arith.constant 1 : index
    %c1_130 = arith.constant 1 : index
    %c0_131 = arith.constant 0 : index
    %79 = vector.load %arg13[%c1_129, %c1_130, %c0_131] : memref<6x6x16xf32, #tpu.memory_space<vmem>>, vector<4x4x16xf32>
    %c1_132 = arith.constant 1 : index
    %c2_133 = arith.constant 2 : index
    %c0_134 = arith.constant 0 : index
    %80 = vector.load %arg13[%c1_132, %c2_133, %c0_134] : memref<6x6x16xf32, #tpu.memory_space<vmem>>, vector<4x4x16xf32>
    %c2_135 = arith.constant 2 : index
    %c0_136 = arith.constant 0 : index
    %c0_137 = arith.constant 0 : index
    %81 = vector.load %arg13[%c2_135, %c0_136, %c0_137] : memref<6x6x16xf32, #tpu.memory_space<vmem>>, vector<4x4x16xf32>
    %c2_138 = arith.constant 2 : index
    %c1_139 = arith.constant 1 : index
    %c0_140 = arith.constant 0 : index
    %82 = vector.load %arg13[%c2_138, %c1_139, %c0_140] : memref<6x6x16xf32, #tpu.memory_space<vmem>>, vector<4x4x16xf32>
    %c2_141 = arith.constant 2 : index
    %c2_142 = arith.constant 2 : index
    %c0_143 = arith.constant 0 : index
    %83 = vector.load %arg13[%c2_141, %c2_142, %c0_143] : memref<6x6x16xf32, #tpu.memory_space<vmem>>, vector<4x4x16xf32>
    %84 = tpu.concatenate %75, %76, %77, %78, %79, %80, %81, %82, %83 in 2 : vector<4x4x16xf32>, vector<4x4x16xf32>, vector<4x4x16xf32>, vector<4x4x16xf32>, vector<4x4x16xf32>, vector<4x4x16xf32>, vector<4x4x16xf32>, vector<4x4x16xf32>, vector<4x4x16xf32> -> vector<4x4x144xf32>
    %85 = vector.shape_cast %84 : vector<4x4x144xf32> to vector<16x144xf32>
    %c0_144 = arith.constant 0 : index
    %c0_145 = arith.constant 0 : index
    %86 = vector.load %arg8[%c0_144, %c0_145] : memref<144x64xf32, #tpu.memory_space<vmem>>, vector<144x64xf32>
    %cst_146 = arith.constant dense<0.000000e+00> : vector<16x64xf32>
    %87 = tpu.matmul %85, %86, %cst_146 {dimension_numbers = #tpu.dot_dimension_numbers<[1], [0], [0], [1], [0, 0, 1, 1], [], []>} : vector<16x144xf32>, vector<144x64xf32>, vector<16x64xf32> -> vector<16x64xf32>
    %c0_147 = arith.constant 0 : index
    %c0_148 = arith.constant 0 : index
    %88 = vector.load %arg9[%c0_147, %c0_148] : memref<1x64xf32, #tpu.memory_space<vmem>>, vector<1x64xf32>
    %89 = vector.broadcast %88 : vector<1x64xf32> to vector<16x64xf32>
    %90 = arith.addf %87, %89 : vector<16x64xf32>
    %cst_149 = arith.constant 0.000000e+00 : f32
    %91 = vector.broadcast %cst_149 : f32 to vector<16x64xf32>
    %92 = arith.maximumf %90, %91 : vector<16x64xf32>
    %93 = vector.shape_cast %92 : vector<16x64xf32> to vector<4x4x64xf32>
    %c0_150 = arith.constant 0 : index
    %c1_151 = arith.constant 1 : index
    %c1_152 = arith.constant 1 : index
    %c0_153 = arith.constant 0 : index
    %94 = vector.load %arg1[%c0_150, %c1_151, %c1_152, %c0_153] : memref<1x5x5x64xf32, #tpu.memory_space<vmem>>, vector<1x4x4x64xf32>
    %95 = vector.shape_cast %94 : vector<1x4x4x64xf32> to vector<4x4x64xf32>
    %96 = arith.addf %93, %95 : vector<4x4x64xf32>
    %c0_154 = arith.constant 0 : index
    %c0_155 = arith.constant 0 : index
    %c0_156 = arith.constant 0 : index
    %c0_157 = arith.constant 0 : index
    %97 = vector.load %arg10[%c0_154, %c0_155, %c0_156, %c0_157] : memref<1x4x4x64xf32, #tpu.memory_space<vmem>>, vector<1x4x4x64xf32>
    %98 = vector.shape_cast %97 : vector<1x4x4x64xf32> to vector<4x4x64xf32>
    %99 = vector.shape_cast %96 : vector<4x4x64xf32> to vector<1x4x4x64xf32>
    tpu.vector_store %arg10[%c0_154, %c0_155, %c0_156, %c0_157], %99 {strides = array<i32>} : memref<1x4x4x64xf32, #tpu.memory_space<vmem>>, vector<1x4x4x64xf32>,
    return
  }
  func.func @transform_0(%arg0: i32) -> (i32, i32, i32, i32) {
    %c0_i32 = arith.constant 0 : i32
    %c0_i32_0 = arith.constant 0 : i32
    %c0_i32_1 = arith.constant 0 : i32
    %c0_i32_2 = arith.constant 0 : i32
    return %arg0, %c0_i32, %c0_i32_0, %c0_i32_1 : i32, i32, i32, i32
  }
  func.func @transform_1(%arg0: i32) -> (i32, i32) {
    %c0_i32 = arith.constant 0 : i32
    %c0_i32_0 = arith.constant 0 : i32
    %c0_i32_1 = arith.constant 0 : i32
    return %c0_i32, %c0_i32_0 : i32, i32
  }
  func.func @transform_2(%arg0: i32) -> (i32, i32) {
    %c0_i32 = arith.constant 0 : i32
    %c0_i32_0 = arith.constant 0 : i32
    %c0_i32_1 = arith.constant 0 : i32
    return %c0_i32, %c0_i32_0 : i32, i32
  }
  func.func @transform_3(%arg0: i32) -> (i32, i32) {
    %c0_i32 = arith.constant 0 : i32
    %c0_i32_0 = arith.constant 0 : i32
    %c0_i32_1 = arith.constant 0 : i32
    return %c0_i32, %c0_i32_0 : i32, i32
  }
  func.func @transform_4(%arg0: i32) -> (i32, i32) {
    %c0_i32 = arith.constant 0 : i32
    %c0_i32_0 = arith.constant 0 : i32
    %c0_i32_1 = arith.constant 0 : i32
    return %c0_i32, %c0_i32_0 : i32, i32
  }
  func.func @transform_5(%arg0: i32) -> (i32, i32) {
    %c0_i32 = arith.constant 0 : i32
    %c0_i32_0 = arith.constant 0 : i32
    %c0_i32_1 = arith.constant 0 : i32
    return %c0_i32, %c0_i32_0 : i32, i32
  }
  func.func @transform_6(%arg0: i32) -> (i32, i32) {
    %c0_i32 = arith.constant 0 : i32
    %c0_i32_0 = arith.constant 0 : i32
    %c0_i32_1 = arith.constant 0 : i32
    return %c0_i32, %c0_i32_0 : i32, i32
  }
  func.func @transform_7(%arg0: i32) -> (i32, i32) {
    %c0_i32 = arith.constant 0 : i32
    %c0_i32_0 = arith.constant 0 : i32
    %c0_i32_1 = arith.constant 0 : i32
    return %c0_i32, %c0_i32_0 : i32, i32
  }
  func.func @transform_8(%arg0: i32) -> (i32, i32) {
    %c0_i32 = arith.constant 0 : i32
    %c0_i32_0 = arith.constant 0 : i32
    %c0_i32_1 = arith.constant 0 : i32
    return %c0_i32, %c0_i32_0 : i32, i32
  }
  func.func @transform_9(%arg0: i32) -> (i32, i32, i32, i32) {
    %c0_i32 = arith.constant 0 : i32
    %c0_i32_0 = arith.constant 0 : i32
    %c0_i32_1 = arith.constant 0 : i32
    %c0_i32_2 = arith.constant 0 : i32
    return %arg0, %c0_i32, %c0_i32_0, %c0_i32_1 : i32, i32, i32, i32
  }
}

</mosaic_0001>

<llo_original>
// kernel: tpu_custom_call.1
$region0: #{tpu_custom_call.1}
  #allocation0 [shape = 'u32[]', space=smem, size = 0x4, offset = 0x4, fixed_abs, tag = 'smem constant byte address 0x4 - core index']
  #allocation1 [shape = 'u32[144,128]{1,0:T(1,128)}', space=vmem, size = 0x12000, scoped, tag = 'internal scratch']
  #allocation2 [shape = 'f32[5,5,16]{2,1,0:T(8,128)}', space=vmem, size = 0x5000, scoped, tag = 'scratch operand']
  #allocation3 [shape = 'f32[6,6,4]{2,1,0:T(8,128)}', space=vmem, size = 0x6000, scoped, tag = 'scratch operand']
  #allocation4 [shape = 'f32[6,6,16]{2,1,0:T(8,128)}', space=vmem, size = 0x6000, scoped, tag = 'scratch operand']
  %s0 = inlined_call_operand.vmem [shape: f32[2,5,5,64], index: 0, kind: input, shape index: {}]
  %s1 = inlined_call_operand.vmem [shape: f32[256,16], index: 1, kind: input, shape index: {}]
  %s2 = inlined_call_operand.vmem [shape: f32[1,16], index: 2, kind: input, shape index: {}]
  %s3 = inlined_call_operand.vmem [shape: f32[64,4], index: 3, kind: input, shape index: {}]
  %s4 = inlined_call_operand.vmem [shape: f32[1,4], index: 4, kind: input, shape index: {}]
  %s5 = inlined_call_operand.vmem [shape: f32[36,16], index: 5, kind: input, shape index: {}]
  %s6 = inlined_call_operand.vmem [shape: f32[1,16], index: 6, kind: input, shape index: {}]
  %s7 = inlined_call_operand.vmem [shape: f32[144,64], index: 7, kind: input, shape index: {}]
  %s8 = inlined_call_operand.vmem [shape: f32[1,64], index: 8, kind: input, shape index: {}]
  %s9 = inlined_call_operand.hbm [shape: f32[2,4,4,64], index: 9, kind: output, shape index: {}]
  %s10 = sld [smem:[#allocation0]]
  $region69: #{tpu_custom_call.1} parent=0
    _
  %s12 = ssub.s32 1, %s10
  %s13 = scalar_select 0, %s12, %s10
  $region1: #{tpu_custom_call.1} parent=0
    #allocation5 [shape = 'u8[16384]{0}', space=vmem, size = 0x4000, scoped, tag = 'output window, operand 0']
    #allocation6 [shape = 's32[2]{0}', space=sflag, size = 0x8, scoped, tag = 'scoped memory for tpu_custom_call.1']
    %14 = vsyncpa [#allocation6], 0
    %s15 = scalar_lea.sflag [#allocation6], 1
    %16 = vsyncpa %s15, 0
    loop: start=0, step=1, limit=4
    $region2: #{tpu_custom_call.1} parent=1 // loop_pre_header
      _
    $region3: #{tpu_custom_call.1} parent=1 // loop_header
      %s18 = sphi 0, %s22
      %p19 = scmp.ge.s32.totalorder %s18, 4
      %s28 = sphi 0, %s30
      %s31 = sphi 0, %s28
      %s32 = sphi 0, %s31
      %s48 = sphi 0, %s32
      %s52 = sphi 0, %s52
      %s54 = sphi 0, %s52
      %s55 = sphi 0, %s54
      %s69 = sphi 0, %s55
      %s73 = sphi 0, %s73
      %s75 = sphi 0, %s73
      %s76 = sphi 0, %s75
      %s90 = sphi 0, %s76
      %s94 = sphi 0, %s94
      %s96 = sphi 0, %s94
      %s97 = sphi 0, %s96
      %s111 = sphi 0, %s97
      %s115 = sphi 0, %s115
      %s117 = sphi 0, %s115
      %s118 = sphi 0, %s117
      %s132 = sphi 0, %s118
      %s136 = sphi 0, %s136
      %s138 = sphi 0, %s136
      %s139 = sphi 0, %s138
      %s153 = sphi 0, %s139
      %s157 = sphi 0, %s157
      %s159 = sphi 0, %s157
      %s160 = sphi 0, %s159
      %s174 = sphi 0, %s160
      %s178 = sphi 0, %s178
      %s180 = sphi 0, %s178
      %s181 = sphi 0, %s180
      %s195 = sphi 0, %s181
      %s199 = sphi 0, %s199
      %s201 = sphi 0, %s199
      %s202 = sphi 0, %s201
      %s216 = sphi 0, %s202
      %s222 = sphi 0, %s224
      %s225 = sphi 0, %s222
      %s226 = sphi 0, %s225
      %s242 = sphi 0, %s226
    $region4: #{tpu_custom_call.1} parent=1 // loop_header_branch
      %21 = sbr.rel (%p19) target = $region8
    $region5: #{tpu_custom_call.1} parent=1 // loop_body
      %s23 = ssub.s32 %s18, 1
      %s24 = ssub.s32 %s18, 2
      %s25 = sadd.s32 %s18, 1
      %s26 = ssub.s32 %s18, %s25
      %p27 = scmp.eq.s32.totalorder %s26, 0
      %s29 = sadd.s32 %s28, 1
      %s30 = scalar_select %p27, %s28, %s29
      %p33 = pneg %p27
      %p34 = scmp.eq.s32.totalorder %s18, 1
      %p35 = por %p33, %p34
      %p36 = scmp.ne.s32.totalorder %s28, %s31
      %p37 = scmp.eq.s32.totalorder %s18, 0
      %p38 = por %p36, %p37
      %p39 = scmp.ne.s32.totalorder %s28, %s31
      %p40 = scmp.eq.s32.totalorder %s23, 1
      %p41 = por %p39, %p40
      %p42 = scmp.ne.s32.totalorder %s31, %s32
      %p43 = scmp.eq.s32.totalorder %s23, 0
      %p44 = por %p42, %p43
      %p45 = scmp.ne.s32.totalorder %s31, %s32
      %p46 = scmp.eq.s32.totalorder %s24, 1
      %p47 = por %p45, %p46
      %p49 = scmp.ne.s32.totalorder %s32, %s48
      %p50 = scmp.eq.s32.totalorder %s24, 0
      %p51 = por %p49, %p50
      %s53 = sadd.s32 %s52, 1
      %p56 = scmp.eq.s32.totalorder %s18, 1
      %p57 = scmp.ne.s32.totalorder %s52, %s54
      %p58 = scmp.eq.s32.totalorder %s18, 0
      %p59 = por %p57, %p58
      %p60 = scmp.ne.s32.totalorder %s52, %s54
      %p61 = scmp.eq.s32.totalorder %s23, 1
      %p62 = por %p60, %p61
      %p63 = scmp.ne.s32.totalorder %s54, %s55
      %p64 = scmp.eq.s32.totalorder %s23, 0
      %p65 = por %p63, %p64
      %p66 = scmp.ne.s32.totalorder %s54, %s55
      %p67 = scmp.eq.s32.totalorder %s24, 1
      %p68 = por %p66, %p67
      %p70 = scmp.ne.s32.totalorder %s55, %s69
      %p71 = scmp.eq.s32.totalorder %s24, 0
      %p72 = por %p70, %p71
      %s74 = sadd.s32 %s73, 1
      %p77 = scmp.eq.s32.totalorder %s18, 1
      %p78 = scmp.ne.s32.totalorder %s73, %s75
      %p79 = scmp.eq.s32.totalorder %s18, 0
      %p80 = por %p78, %p79
      %p81 = scmp.ne.s32.totalorder %s73, %s75
      %p82 = scmp.eq.s32.totalorder %s23, 1
      %p83 = por %p81, %p82
      %p84 = scmp.ne.s32.totalorder %s75, %s76
      %p85 = scmp.eq.s32.totalorder %s23, 0
      %p86 = por %p84, %p85
      %p87 = scmp.ne.s32.totalorder %s75, %s76
      %p88 = scmp.eq.s32.totalorder %s24, 1
      %p89 = por %p87, %p88
      %p91 = scmp.ne.s32.totalorder %s76, %s90
      %p92 = scmp.eq.s32.totalorder %s24, 0
      %p93 = por %p91, %p92
      %s95 = sadd.s32 %s94, 1
      %p98 = scmp.eq.s32.totalorder %s18, 1
      %p99 = scmp.ne.s32.totalorder %s94, %s96
      %p100 = scmp.eq.s32.totalorder %s18, 0
      %p101 = por %p99, %p100
      %p102 = scmp.ne.s32.totalorder %s94, %s96
      %p103 = scmp.eq.s32.totalorder %s23, 1
      %p104 = por %p102, %p103
      %p105 = scmp.ne.s32.totalorder %s96, %s97
      %p106 = scmp.eq.s32.totalorder %s23, 0
      %p107 = por %p105, %p106
      %p108 = scmp.ne.s32.totalorder %s96, %s97
      %p109 = scmp.eq.s32.totalorder %s24, 1
      %p110 = por %p108, %p109
      %p112 = scmp.ne.s32.totalorder %s97, %s111
      %p113 = scmp.eq.s32.totalorder %s24, 0
      %p114 = por %p112, %p113
      %s116 = sadd.s32 %s115, 1
      %p119 = scmp.eq.s32.totalorder %s18, 1
      %p120 = scmp.ne.s32.totalorder %s115, %s117
      %p121 = scmp.eq.s32.totalorder %s18, 0
      %p122 = por %p120, %p121
      %p123 = scmp.ne.s32.totalorder %s115, %s117
      %p124 = scmp.eq.s32.totalorder %s23, 1
      %p125 = por %p123, %p124
      %p126 = scmp.ne.s32.totalorder %s117, %s118
      %p127 = scmp.eq.s32.totalorder %s23, 0
      %p128 = por %p126, %p127
      %p129 = scmp.ne.s32.totalorder %s117, %s118
      %p130 = scmp.eq.s32.totalorder %s24, 1
      %p131 = por %p129, %p130
      %p133 = scmp.ne.s32.totalorder %s118, %s132
      %p134 = scmp.eq.s32.totalorder %s24, 0
      %p135 = por %p133, %p134
      %s137 = sadd.s32 %s136, 1
      %p140 = scmp.eq.s32.totalorder %s18, 1
      %p141 = scmp.ne.s32.totalorder %s136, %s138
      %p142 = scmp.eq.s32.totalorder %s18, 0
      %p143 = por %p141, %p142
      %p144 = scmp.ne.s32.totalorder %s136, %s138
      %p145 = scmp.eq.s32.totalorder %s23, 1
      %p146 = por %p144, %p145
      %p147 = scmp.ne.s32.totalorder %s138, %s139
      %p148 = scmp.eq.s32.totalorder %s23, 0
      %p149 = por %p147, %p148
      %p150 = scmp.ne.s32.totalorder %s138, %s139
      %p151 = scmp.eq.s32.totalorder %s24, 1
      %p152 = por %p150, %p151
      %p154 = scmp.ne.s32.totalorder %s139, %s153
      %p155 = scmp.eq.s32.totalorder %s24, 0
      %p156 = por %p154, %p155
      %s158 = sadd.s32 %s157, 1
      %p161 = scmp.eq.s32.totalorder %s18, 1
      %p162 = scmp.ne.s32.totalorder %s157, %s159
      %p163 = scmp.eq.s32.totalorder %s18, 0
      %p164 = por %p162, %p163
      %p165 = scmp.ne.s32.totalorder %s157, %s159
      %p166 = scmp.eq.s32.totalorder %s23, 1
      %p167 = por %p165, %p166
      %p168 = scmp.ne.s32.totalorder %s159, %s160
      %p169 = scmp.eq.s32.totalorder %s23, 0
      %p170 = por %p168, %p169
      %p171 = scmp.ne.s32.totalorder %s159, %s160
      %p172 = scmp.eq.s32.totalorder %s24, 1
      %p173 = por %p171, %p172
      %p175 = scmp.ne.s32.totalorder %s160, %s174
      %p176 = scmp.eq.s32.totalorder %s24, 0
      %p177 = por %p175, %p176
      %s179 = sadd.s32 %s178, 1
      %p182 = scmp.eq.s32.totalorder %s18, 1
      %p183 = scmp.ne.s32.totalorder %s178, %s180
      %p184 = scmp.eq.s32.totalorder %s18, 0
      %p185 = por %p183, %p184
      %p186 = scmp.ne.s32.totalorder %s178, %s180
      %p187 = scmp.eq.s32.totalorder %s23, 1
      %p188 = por %p186, %p187
      %p189 = scmp.ne.s32.totalorder %s180, %s181
      %p190 = scmp.eq.s32.totalorder %s23, 0
      %p191 = por %p189, %p190
      %p192 = scmp.ne.s32.totalorder %s180, %s181
      %p193 = scmp.eq.s32.totalorder %s24, 1
      %p194 = por %p192, %p193
      %p196 = scmp.ne.s32.totalorder %s181, %s195
      %p197 = scmp.eq.s32.totalorder %s24, 0
      %p198 = por %p196, %p197
      %s200 = sadd.s32 %s199, 1
      %p203 = scmp.eq.s32.totalorder %s18, 1
      %p204 = scmp.ne.s32.totalorder %s199, %s201
      %p205 = scmp.eq.s32.totalorder %s18, 0
      %p206 = por %p204, %p205
      %p207 = scmp.ne.s32.totalorder %s199, %s201
      %p208 = scmp.eq.s32.totalorder %s23, 1
      %p209 = por %p207, %p208
      %p210 = scmp.ne.s32.totalorder %s201, %s202
      %p211 = scmp.eq.s32.totalorder %s23, 0
      %p212 = por %p210, %p211
      %p213 = scmp.ne.s32.totalorder %s201, %s202
      %p214 = scmp.eq.s32.totalorder %s24, 1
      %p215 = por %p213, %p214
      %p217 = scmp.ne.s32.totalorder %s202, %s216
      %p218 = scmp.eq.s32.totalorder %s24, 0
      %p219 = por %p217, %p218
      %s220 = ssub.s32 %s18, %s25
      %p221 = scmp.eq.s32.totalorder %s220, 0
      %s223 = sadd.s32 %s222, 1
      %s224 = scalar_select %p221, %s222, %s223
      %p227 = pneg %p221
      %p228 = scmp.eq.s32.totalorder %s18, 1
      %p229 = por %p227, %p228
      %p230 = scmp.ne.s32.totalorder %s222, %s225
      %p231 = scmp.eq.s32.totalorder %s18, 0
      %p232 = por %p230, %p231
      %p233 = scmp.ne.s32.totalorder %s222, %s225
      %p234 = scmp.eq.s32.totalorder %s23, 1
      %p235 = por %p233, %p234
      %p236 = scmp.ne.s32.totalorder %s225, %s226
      %p237 = scmp.eq.s32.totalorder %s23, 0
      %p238 = por %p236, %p237
      %p239 = scmp.ne.s32.totalorder %s225, %s226
      %p240 = scmp.eq.s32.totalorder %s24, 1
      %p241 = por %p239, %p240
      %p243 = scmp.ne.s32.totalorder %s226, %s242
      %p244 = scmp.eq.s32.totalorder %s24, 0
      %p245 = por %p243, %p244
      %p246 = scmp.le.s32.totalorder 1, %s18
      %p247 = scmp.lt.s32.totalorder %s18, 3
      %p248 = pnand %p246, %p247
      %p249 = pneg %p248
      // Predicated region
      $region9: #{tpu_custom_call.1} parent=5 // pred_check
        _
      $region10: #{tpu_custom_call.1} parent=5 // pred_check_branch
        %251 = sbr.rel (%p248) target = $region12
      $region11: #{tpu_custom_call.1} parent=5 // pred_region
        %s252 = ssub.s32 %s18, 1
        // Predicated region
        $region13: #{tpu_custom_call.1} parent=11 // pred_check
          %p253 = pneg %p65
        $region14: #{tpu_custom_call.1} parent=11 // pred_check_branch
          %255 = sbr.rel (%p253) target = $region16
        $region15: #{tpu_custom_call.1} parent=11 // pred_region
          _
        $region16: #{tpu_custom_call.1} parent=11 // pred_fallthru
          _
        // Predicated region
        $region17: #{tpu_custom_call.1} parent=11 // pred_check
          %p256 = pneg %p86
        $region18: #{tpu_custom_call.1} parent=11 // pred_check_branch
          %258 = sbr.rel (%p256) target = $region20
        $region19: #{tpu_custom_call.1} parent=11 // pred_region
          _
        $region20: #{tpu_custom_call.1} parent=11 // pred_fallthru
          _
        // Predicated region
        $region21: #{tpu_custom_call.1} parent=11 // pred_check
          %p259 = pneg %p107
        $region22: #{tpu_custom_call.1} parent=11 // pred_check_branch
          %261 = sbr.rel (%p259) target = $region24
        $region23: #{tpu_custom_call.1} parent=11 // pred_region
          _
        $region24: #{tpu_custom_call.1} parent=11 // pred_fallthru
          _
        // Predicated region
        $region25: #{tpu_custom_call.1} parent=11 // pred_check
          %p262 = pneg %p128
        $region26: #{tpu_custom_call.1} parent=11 // pred_check_branch
          %264 = sbr.rel (%p262) target = $region28
        $region27: #{tpu_custom_call.1} parent=11 // pred_region
          _
        $region28: #{tpu_custom_call.1} parent=11 // pred_fallthru
          _
        // Predicated region
        $region29: #{tpu_custom_call.1} parent=11 // pred_check
          %p265 = pneg %p149
        $region30: #{tpu_custom_call.1} parent=11 // pred_check_branch
          %267 = sbr.rel (%p265) target = $region32
        $region31: #{tpu_custom_call.1} parent=11 // pred_region
          _
        $region32: #{tpu_custom_call.1} parent=11 // pred_fallthru
          _
        // Predicated region
        $region33: #{tpu_custom_call.1} parent=11 // pred_check
          %p268 = pneg %p170
        $region34: #{tpu_custom_call.1} parent=11 // pred_check_branch
          %270 = sbr.rel (%p268) target = $region36
        $region35: #{tpu_custom_call.1} parent=11 // pred_region
          _
        $region36: #{tpu_custom_call.1} parent=11 // pred_fallthru
          _
        // Predicated region
        $region37: #{tpu_custom_call.1} parent=11 // pred_check
          %p271 = pneg %p191
        $region38: #{tpu_custom_call.1} parent=11 // pred_check_branch
          %273 = sbr.rel (%p271) target = $region40
        $region39: #{tpu_custom_call.1} parent=11 // pred_region
          _
        $region40: #{tpu_custom_call.1} parent=11 // pred_fallthru
          _
        // Predicated region
        $region41: #{tpu_custom_call.1} parent=11 // pred_check
          %p274 = pneg %p212
        $region42: #{tpu_custom_call.1} parent=11 // pred_check_branch
          %276 = sbr.rel (%p274) target = $region44
        $region43: #{tpu_custom_call.1} parent=11 // pred_region
          _
        $region44: #{tpu_custom_call.1} parent=11 // pred_fallthru
          _
      $region12: #{tpu_custom_call.1} parent=5 // pred_fallthru
        _
      %p277 = scmp.lt.s32.totalorder %s18, 2
      // Predicated region
      $region45: #{tpu_custom_call.1} parent=5 // pred_check
        %p278 = pneg %p277
      $region46: #{tpu_custom_call.1} parent=5 // pred_check_branch
        %280 = sbr.rel (%p278) target = $region48
      $region47: #{tpu_custom_call.1} parent=5 // pred_region
        // Predicated region
        $region49: #{tpu_custom_call.1} parent=47 // pred_check
          %p281 = pneg %p38
        $region50: #{tpu_custom_call.1} parent=47 // pred_check_branch
          %283 = sbr.rel (%p281) target = $region52
        $region51: #{tpu_custom_call.1} parent=47 // pred_region
          %p284 = scmp.lt.s32.totalorder %s18, 1
          %s285 = scalar_select %p284, %s18, 1
          %s286 = smul.addr %s285, 5
          %s287 = smul.addr %s286, 8
          %s288 = scalar_lea.vmem %s0, %s287
        $region52: #{tpu_custom_call.1} parent=47 // pred_fallthru
          _
      $region48: #{tpu_custom_call.1} parent=5 // pred_fallthru
        _
      %p289 = scmp.le.s32.totalorder 1, %s18
      %p290 = scmp.lt.s32.totalorder %s18, 3
      %p291 = pnand %p289, %p290
      %p292 = pneg %p291
      // Predicated region
      $region53: #{tpu_custom_call.1} parent=5 // pred_check
        _
      $region54: #{tpu_custom_call.1} parent=5 // pred_check_branch
        %294 = sbr.rel (%p291) target = $region56
      $region55: #{tpu_custom_call.1} parent=5 // pred_region
        %s295 = ssub.s32 %s18, 1
        %p296 = scmp.lt.s32.totalorder %s23, 1
        %s297 = scalar_select %p296, %s23, 1
        %s298 = smul.addr %s297, 5
        %s299 = smul.addr %s298, 8
        %s300 = scalar_lea.vmem %s0, %s299
        %p301 = pneg %p44
        %p302 = pneg %p41
        %p303 = pneg %p65
        %p304 = pneg %p62
        %p305 = pneg %p86
        %p306 = pneg %p83
        %p307 = pneg %p107
        %p308 = pneg %p104
        %p309 = pneg %p128
        %p310 = pneg %p125
        %p311 = pneg %p149
        %p312 = pneg %p146
        %p313 = pneg %p170
        %p314 = pneg %p167
        %p315 = pneg %p191
        %p316 = pneg %p188
        %p317 = pneg %p212
        %p318 = pneg %p209
        %p319 = pneg %p238
        %p320 = pneg %p235
        %s321 = sand.u32 %s225, 1
        %s322 = scalar_lea.sflag [#allocation6], %s321
        %s323 = sand.u32 %s225, 1
        %s324 = smul.addr %s323, 16
        %s325 = scalar_lea.vmem [#allocation5], %s324
        %p326 = scmp.lt.s32.totalorder %s23, 1
        %s327 = scalar_select %p326, %s23, 1
        %s328 = smul.addr %s327, 5
        %s329 = smul.addr %s328, 8
        %s330 = scalar_lea.vmem %s0, %s329
        %vm331 = vcmask 126976
        %332 = vst.msk [vmem:[#allocation2] sm:$0x1f] %vm331, 0.0
        %vm333 = vcmask 122880
        %334 = vst.msk [vmem:[#allocation2] sm:$0x1] %vm333, 0.0
        %335 = vst.msk [vmem:[#allocation2 + $0x8] sm:$0x1] %vm333, 0.0
        %336 = vst.msk [vmem:[#allocation2 + $0x10] sm:$0x1] %vm333, 0.0
        %337 = vst.msk [vmem:[#allocation2 + $0x18] sm:$0x1] %vm333, 0.0
        %338 = vst.msk [vmem:[#allocation2 + $0x20] sm:$0x1] %vm333, 0.0
        %vm339 = vcmask 29696
        %340 = vst.msk [vmem:[#allocation3] sm:$0x3f] %vm339, 0.0
        %s341 = scalar_lea.vmem [#allocation3], 40
        %342 = vst.msk [vmem:[%s341] sm:$0x3f] %vm339, 0.0
        %vm343 = vcmask 24576
        %344 = vst.msk [vmem:[#allocation3] sm:$0x1] %vm343, 0.0
        %345 = vst.msk [vmem:[#allocation3 + $0x8] sm:$0x1] %vm343, 0.0
        %346 = vst.msk [vmem:[#allocation3 + $0x10] sm:$0x1] %vm343, 0.0
        %347 = vst.msk [vmem:[#allocation3 + $0x18] sm:$0x1] %vm343, 0.0
        %348 = vst.msk [vmem:[#allocation3 + $0x20] sm:$0x1] %vm343, 0.0
        %349 = vst.msk [vmem:[#allocation3 + $0x28] sm:$0x1] %vm343, 0.0
        %350 = vst.msk [vmem:[#allocation3 + $0x5] sm:$0x1] %vm343, 0.0
        %351 = vst.msk [vmem:[#allocation3 + $0xd] sm:$0x1] %vm343, 0.0
        %352 = vst.msk [vmem:[#allocation3 + $0x15] sm:$0x1] %vm343, 0.0
        %353 = vst.msk [vmem:[#allocation3 + $0x1d] sm:$0x1] %vm343, 0.0
        %354 = vst.msk [vmem:[#allocation3 + $0x25] sm:$0x1] %vm343, 0.0
        %355 = vst.msk [vmem:[#allocation3 + $0x2d] sm:$0x1] %vm343, 0.0
        %vm356 = vcmask 128000
        %357 = vst.msk [vmem:[#allocation4] sm:$0x3f] %vm356, 0.0
        %s358 = scalar_lea.vmem [#allocation4], 40
        %359 = vst.msk [vmem:[%s358] sm:$0x3f] %vm356, 0.0
        %360 = vst.msk [vmem:[#allocation4] sm:$0x1] %vm333, 0.0
        %361 = vst.msk [vmem:[#allocation4 + $0x8] sm:$0x1] %vm333, 0.0
        %362 = vst.msk [vmem:[#allocation4 + $0x10] sm:$0x1] %vm333, 0.0
        %363 = vst.msk [vmem:[#allocation4 + $0x18] sm:$0x1] %vm333, 0.0
        %364 = vst.msk [vmem:[#allocation4 + $0x20] sm:$0x1] %vm333, 0.0
        %365 = vst.msk [vmem:[#allocation4 + $0x28] sm:$0x1] %vm333, 0.0
        %366 = vst.msk [vmem:[#allocation4 + $0x5] sm:$0x1] %vm333, 0.0
        %367 = vst.msk [vmem:[#allocation4 + $0xd] sm:$0x1] %vm333, 0.0
        %368 = vst.msk [vmem:[#allocation4 + $0x15] sm:$0x1] %vm333, 0.0
        %369 = vst.msk [vmem:[#allocation4 + $0x1d] sm:$0x1] %vm333, 0.0
        %370 = vst.msk [vmem:[#allocation4 + $0x25] sm:$0x1] %vm333, 0.0
        %371 = vst.msk [vmem:[#allocation4 + $0x2d] sm:$0x1] %vm333, 0.0
        %v372 = vld [vmem:[%s330] sm:$0xf]
        %v373 = vld [vmem:[%s330 + $0x8] sm:$0xf]
        %v374 = vld [vmem:[%s330 + $0x10] sm:$0xf]
        %v375 = vld [vmem:[%s330 + $0x18] sm:$0xf]
        %v376 = vld [vmem:[%s330 + $0x1] sm:$0xf]
        %v377 = vld [vmem:[%s330 + $0x9] sm:$0xf]
        %v378 = vld [vmem:[%s330 + $0x11] sm:$0xf]
        %v379 = vld [vmem:[%s330 + $0x19] sm:$0xf]
        %s380 = scalar_lea.vmem %s330, 8
        %v381 = vld [vmem:[%s380] sm:$0xf]
        %v382 = vld [vmem:[%s380 + $0x8] sm:$0xf]
        %v383 = vld [vmem:[%s380 + $0x10] sm:$0xf]
        %v384 = vld [vmem:[%s380 + $0x18] sm:$0xf]
        %v385 = vld [vmem:[%s380 + $0x1] sm:$0xf]
        %v386 = vld [vmem:[%s380 + $0x9] sm:$0xf]
        %v387 = vld [vmem:[%s380 + $0x11] sm:$0xf]
        %v388 = vld [vmem:[%s380 + $0x19] sm:$0xf]
        %393 = vrot.lane.b32.xlu0 %v376, 64
        %v394 = vpop.permute.xlu0 %393
        %395 = vrot.lane.b32.xlu0 %v377, 64
        %v396 = vpop.permute.xlu0 %395
        %397 = vrot.lane.b32.xlu0 %v378, 64
        %v398 = vpop.permute.xlu0 %397
        %399 = vrot.lane.b32.xlu0 %v379, 64
        %v400 = vpop.permute.xlu0 %399
        %409 = vrot.lane.b32.xlu0 %v385, 64
        %v410 = vpop.permute.xlu0 %409
        %411 = vrot.lane.b32.xlu0 %v386, 64
        %v412 = vpop.permute.xlu0 %411
        %413 = vrot.lane.b32.xlu0 %v387, 64
        %v414 = vpop.permute.xlu0 %413
        %415 = vrot.lane.b32.xlu0 %v388, 64
        %v416 = vpop.permute.xlu0 %415
        %vm421 = vcmask 523264
        %v422 = vsel %vm421, %v372, %v394
        %v423 = vsel %vm421, %v373, %v396
        %v424 = vsel %vm421, %v374, %v398
        %v425 = vsel %vm421, %v375, %v400
        %v426 = vsel %vm421, %v381, %v410
        %v427 = vsel %vm421, %v382, %v412
        %v428 = vsel %vm421, %v383, %v414
        %v429 = vsel %vm421, %v384, %v416
        %v438 = vcombine.low %v422, %v426
        %v439 = vcombine.low %v423, %v427
        %v440 = vcombine.low %v424, %v428
        %v441 = vcombine.low %v425, %v429
        %v442 = vld [vmem:[%s1] sm:$0xff]
        %v443 = vld [vmem:[%s1 + $0x8] sm:$0xff]
        %v444 = vld [vmem:[%s1 + $0x10] sm:$0xff]
        %v445 = vld [vmem:[%s1 + $0x18] sm:$0xff]
        %v446 = vld [vmem:[%s1 + $0x20] sm:$0xff]
        %v447 = vld [vmem:[%s1 + $0x28] sm:$0xff]
        %v448 = vld [vmem:[%s1 + $0x30] sm:$0xff]
        %v449 = vld [vmem:[%s1 + $0x38] sm:$0xff]
        %v450 = vld [vmem:[%s1 + $0x40] sm:$0xff]
        %v451 = vld [vmem:[%s1 + $0x48] sm:$0xff]
        %v452 = vld [vmem:[%s1 + $0x50] sm:$0xff]
        %v453 = vld [vmem:[%s1 + $0x58] sm:$0xff]
        %v454 = vld [vmem:[%s1 + $0x60] sm:$0xff]
        %v455 = vld [vmem:[%s1 + $0x68] sm:$0xff]
        %v456 = vld [vmem:[%s1 + $0x70] sm:$0xff]
        %v457 = vld [vmem:[%s1 + $0x78] sm:$0xff]
        %v458 = vld [vmem:[%s1 + $0x80] sm:$0xff]
        %v459 = vld [vmem:[%s1 + $0x88] sm:$0xff]
        %v460 = vld [vmem:[%s1 + $0x90] sm:$0xff]
        %v461 = vld [vmem:[%s1 + $0x98] sm:$0xff]
        %v462 = vld [vmem:[%s1 + $0xa0] sm:$0xff]
        %v463 = vld [vmem:[%s1 + $0xa8] sm:$0xff]
        %v464 = vld [vmem:[%s1 + $0xb0] sm:$0xff]
        %v465 = vld [vmem:[%s1 + $0xb8] sm:$0xff]
        %v466 = vld [vmem:[%s1 + $0xc0] sm:$0xff]
        %v467 = vld [vmem:[%s1 + $0xc8] sm:$0xff]
        %v468 = vld [vmem:[%s1 + $0xd0] sm:$0xff]
        %v469 = vld [vmem:[%s1 + $0xd8] sm:$0xff]
        %v470 = vld [vmem:[%s1 + $0xe0] sm:$0xff]
        %v471 = vld [vmem:[%s1 + $0xe8] sm:$0xff]
        %v472 = vld [vmem:[%s1 + $0xf0] sm:$0xff]
        %v473 = vld [vmem:[%s1 + $0xf8] sm:$0xff]
        %v474 = vld [vmem:[%s2] sm:$0x1]
        %v476 = vlaneseq
        %v477 = vshrl.u32 %v476, 7
        %v478 = vsub.s32 0, %v477
        %v479 = vrot.slane %v474, %v478
        %v481 = vcombine.low %v438, %v439
        %v482 = vcombine.high %v438, %v439
        %v483 = vcombine.low %v440, %v441
        %v484 = vcombine.high %v440, %v441
        %489 = vmatprep.subr.mxu0 0.0
        %490 = vmatpush1.msra.mxu0 %v442
        %491 = vmatprep.subr.mxu0 0.0
        %492 = vmatpush1.msra.mxu0 %v443
        %493 = vmatprep.subr.mxu0 0.0
        %494 = vmatpush1.msra.mxu0 %v444
        %495 = vmatprep.subr.mxu0 0.0
        %496 = vmatpush1.msra.mxu0 %v445
        %497 = vmatprep.subr.mxu0 0.0
        %498 = vmatpush1.msra.mxu0 %v446
        %499 = vmatprep.subr.mxu0 0.0
        %500 = vmatpush1.msra.mxu0 %v447
        %501 = vmatprep.subr.mxu0 0.0
        %502 = vmatpush1.msra.mxu0 %v448
        %503 = vmatprep.subr.mxu0 0.0
        %504 = vmatpush1.msra.mxu0 %v449
        %505 = vmatprep.subr.mxu0 0.0
        %506 = vmatpush1.msra.mxu0 %v450
        %507 = vmatprep.subr.mxu0 0.0
        %508 = vmatpush1.msra.mxu0 %v451
        %509 = vmatprep.subr.mxu0 0.0
        %510 = vmatpush1.msra.mxu0 %v452
        %511 = vmatprep.subr.mxu0 0.0
        %512 = vmatpush1.msra.mxu0 %v453
        %513 = vmatprep.subr.mxu0 0.0
        %514 = vmatpush1.msra.mxu0 %v454
        %515 = vmatprep.subr.mxu0 0.0
        %516 = vmatpush1.msra.mxu0 %v455
        %517 = vmatprep.subr.mxu0 0.0
        %518 = vmatpush1.msra.mxu0 %v456
        %519 = vmatprep.subr.mxu0 0.0
        %520 = vmatpush1.msra.mxu0 %v457
        %521 = vmatprep.subr.mxu0 0.0
        %522 = vmatpush1.msra.mxu0 %v458
        %523 = vmatprep.subr.mxu0 0.0
        %524 = vmatpush1.msra.mxu0 %v459
        %525 = vmatprep.subr.mxu0 0.0
        %526 = vmatpush1.msra.mxu0 %v460
        %527 = vmatprep.subr.mxu0 0.0
        %528 = vmatpush1.msra.mxu0 %v461
        %529 = vmatprep.subr.mxu0 0.0
        %530 = vmatpush1.msra.mxu0 %v462
        %531 = vmatprep.subr.mxu0 0.0
        %532 = vmatpush1.msra.mxu0 %v463
        %533 = vmatprep.subr.mxu0 0.0
        %534 = vmatpush1.msra.mxu0 %v464
        %535 = vmatprep.subr.mxu0 0.0
        %536 = vmatpush1.msra.mxu0 %v465
        %537 = vmatprep.subr.mxu0 0.0
        %538 = vmatpush1.msra.mxu0 %v466
        %539 = vmatprep.subr.mxu0 0.0
        %540 = vmatpush1.msra.mxu0 %v467
        %541 = vmatprep.subr.mxu0 0.0
        %542 = vmatpush1.msra.mxu0 %v468
        %543 = vmatprep.subr.mxu0 0.0
        %544 = vmatpush1.msra.mxu0 %v469
        %545 = vmatprep.subr.mxu0 0.0
        %546 = vmatpush1.msra.mxu0 %v470
        %547 = vmatprep.subr.mxu0 0.0
        %548 = vmatpush1.msra.mxu0 %v471
        %549 = vmatprep.subr.mxu0 0.0
        %550 = vmatpush1.msra.mxu0 %v472
        %551 = vmatprep.subr.mxu0 0.0
        %552 = vmatpush1.msra.mxu0 %v473
        %553 = vmatprep.mubr.f32.mxu0 %v482
        %554 = vmatmul.mubr.f32.gmra.mrb[0].mxu0 %v481
        %v555 = vpop.f32.mrb[0].mxu0
        %v556 = vadd.f32 %v479, %v555
        %v557 = vpop.f32.mrb[0].mxu0
        %558 = vmatprep.mubr.f32.mxu0 %v484
        %559 = vmatmul.mubr.f32.gmra.mrb[0].mxu0 %v483
        %v560 = vpop.f32.mrb[0].mxu0
        %v561 = vadd.f32 %v479, %v560
        %v562 = vpop.f32.mrb[0].mxu0
        %563 = vdwg.mxu0
        %v564 = vmax.f32 %v556, 0.0
        %v565 = vmax.f32 %v561, 0.0
        %v568 = vcombine.high %v564, %v564
        %v569 = vcombine.high %v565, %v565
        %s572 = scalar_lea.vmem [#allocation2], 8
        %vm573 = vcmask 125952
        %574 = vst.msk [vmem:[%s572 + $0x1] sm:$0xf] %vm573, %v564
        %575 = vst.msk [vmem:[%s572 + $0x9] sm:$0xf] %vm573, %v568
        %576 = vst.msk [vmem:[%s572 + $0x11] sm:$0xf] %vm573, %v565
        %577 = vst.msk [vmem:[%s572 + $0x19] sm:$0xf] %vm573, %v569
        %v578 = vld [vmem:[#allocation2] sm:$0xf]
        %v579 = vld [vmem:[#allocation2 + $0x8] sm:$0xf]
        %v580 = vld [vmem:[#allocation2 + $0x10] sm:$0xf]
        %v581 = vld [vmem:[#allocation2 + $0x18] sm:$0xf]
        %v582 = vld [vmem:[#allocation2 + $0x1] sm:$0xf]
        %v583 = vld [vmem:[#allocation2 + $0x9] sm:$0xf]
        %v584 = vld [vmem:[#allocation2 + $0x11] sm:$0xf]
        %v585 = vld [vmem:[#allocation2 + $0x19] sm:$0xf]
        %v586 = vld [vmem:[%s572] sm:$0xf]
        %v587 = vld [vmem:[%s572 + $0x8] sm:$0xf]
        %v588 = vld [vmem:[%s572 + $0x10] sm:$0xf]
        %v589 = vld [vmem:[%s572 + $0x18] sm:$0xf]
        %v590 = vld [vmem:[%s572 + $0x1] sm:$0xf]
        %v591 = vld [vmem:[%s572 + $0x9] sm:$0xf]
        %v592 = vld [vmem:[%s572 + $0x11] sm:$0xf]
        %v593 = vld [vmem:[%s572 + $0x19] sm:$0xf]
        %598 = vrot.lane.b32.xlu0 %v582, 16
        %v599 = vpop.permute.xlu0 %598
        %600 = vrot.lane.b32.xlu0 %v583, 16
        %v601 = vpop.permute.xlu0 %600
        %602 = vrot.lane.b32.xlu0 %v584, 16
        %v603 = vpop.permute.xlu0 %602
        %604 = vrot.lane.b32.xlu0 %v585, 16
        %v605 = vpop.permute.xlu0 %604
        %614 = vrot.lane.b32.xlu0 %v586, 32
        %v615 = vpop.permute.xlu0 %614
        %616 = vrot.lane.b32.xlu0 %v587, 32
        %v617 = vpop.permute.xlu0 %616
        %618 = vrot.lane.b32.xlu0 %v588, 32
        %v619 = vpop.permute.xlu0 %618
        %620 = vrot.lane.b32.xlu0 %v589, 32
        %v621 = vpop.permute.xlu0 %620
        %630 = vrot.lane.b32.xlu0 %v590, 48
        %v631 = vpop.permute.xlu0 %630
        %632 = vrot.lane.b32.xlu0 %v591, 48
        %v633 = vpop.permute.xlu0 %632
        %634 = vrot.lane.b32.xlu0 %v592, 48
        %v635 = vpop.permute.xlu0 %634
        %636 = vrot.lane.b32.xlu0 %v593, 48
        %v637 = vpop.permute.xlu0 %636
        %vm642 = vcmask 130048
        %v643 = vsel %vm642, %v578, %v599
        %v644 = vsel %vm642, %v579, %v601
        %v645 = vsel %vm642, %v580, %v603
        %v646 = vsel %vm642, %v581, %v605
        %vm647 = vcmask 261120
        %v648 = vsel %vm647, %v643, %v615
        %v649 = vsel %vm647, %v644, %v617
        %v650 = vsel %vm647, %v645, %v619
        %v651 = vsel %vm647, %v646, %v621
        %vm652 = vcmask 392192
        %v653 = vsel %vm652, %v648, %v631
        %v654 = vsel %vm652, %v649, %v633
        %v655 = vsel %vm652, %v650, %v635
        %v656 = vsel %vm652, %v651, %v637
        %v657 = vld [vmem:[%s3] sm:$0xff]
        %v658 = vld [vmem:[%s3 + $0x8] sm:$0xff]
        %v659 = vld [vmem:[%s3 + $0x10] sm:$0xff]
        %v660 = vld [vmem:[%s3 + $0x18] sm:$0xff]
        %v661 = vld [vmem:[%s3 + $0x20] sm:$0xff]
        %v662 = vld [vmem:[%s3 + $0x28] sm:$0xff]
        %v663 = vld [vmem:[%s3 + $0x30] sm:$0xff]
        %v664 = vld [vmem:[%s3 + $0x38] sm:$0xff]
        %v665 = vld [vmem:[%s4] sm:$0x1]
        %v667 = vlaneseq
        %v668 = vshrl.u32 %v667, 7
        %v669 = vsub.s32 0, %v668
        %v670 = vrot.slane %v665, %v669
        %v676 = vcombine.low %v653, %v654
        %v677 = vcombine.low %v655, %v656
        %v678 = vsel %vm421, %v676, 0
        %v680 = vsel %vm421, %v677, 0
        %682 = vmatprep.subr.mxu0 0.0
        %683 = vmatpush1.msra.mxu0 %v657
        %684 = vmatprep.subr.mxu0 0.0
        %685 = vmatpush1.msra.mxu0 %v658
        %686 = vmatprep.subr.mxu0 0.0
        %687 = vmatpush1.msra.mxu0 %v659
        %688 = vmatprep.subr.mxu0 0.0
        %689 = vmatpush1.msra.mxu0 %v660
        %690 = vmatprep.subr.mxu0 0.0
        %691 = vmatpush1.msra.mxu0 %v661
        %692 = vmatprep.subr.mxu0 0.0
        %693 = vmatpush1.msra.mxu0 %v662
        %694 = vmatprep.subr.mxu0 0.0
        %695 = vmatpush1.msra.mxu0 %v663
        %696 = vmatprep.subr.mxu0 0.0
        %697 = vmatpush1.msra.mxu0 %v664
        %698 = vmatprep.subr.mxu0 0.0
        %699 = vmatpush1.msra.mxu0 0.0
        %700 = vmatprep.subr.mxu0 0.0
        %701 = vmatpush1.msra.mxu0 0.0
        %702 = vmatprep.subr.mxu0 0.0
        %703 = vmatpush1.msra.mxu0 0.0
        %704 = vmatprep.subr.mxu0 0.0
        %705 = vmatpush1.msra.mxu0 0.0
        %706 = vmatprep.subr.mxu0 0.0
        %707 = vmatpush1.msra.mxu0 0.0
        %708 = vmatprep.subr.mxu0 0.0
        %709 = vmatpush1.msra.mxu0 0.0
        %710 = vmatprep.subr.mxu0 0.0
        %711 = vmatpush1.msra.mxu0 0.0
        %712 = vmatprep.subr.mxu0 0.0
        %713 = vmatpush1.msra.mxu0 0.0
        %714 = vmatprep.subr.mxu0 0.0
        %715 = vmatpush1.msra.mxu0 0.0
        %716 = vmatprep.subr.mxu0 0.0
        %717 = vmatpush1.msra.mxu0 0.0
        %718 = vmatprep.subr.mxu0 0.0
        %719 = vmatpush1.msra.mxu0 0.0
        %720 = vmatprep.subr.mxu0 0.0
        %721 = vmatpush1.msra.mxu0 0.0
        %722 = vmatprep.subr.mxu0 0.0
        %723 = vmatpush1.msra.mxu0 0.0
        %724 = vmatprep.subr.mxu0 0.0
        %725 = vmatpush1.msra.mxu0 0.0
        %726 = vmatprep.subr.mxu0 0.0
        %727 = vmatpush1.msra.mxu0 0.0
        %728 = vmatprep.subr.mxu0 0.0
        %729 = vmatpush1.msra.mxu0 0.0
        %730 = vmatprep.subr.mxu0 0.0
        %731 = vmatpush1.msra.mxu0 0.0
        %732 = vmatprep.subr.mxu0 0.0
        %733 = vmatpush1.msra.mxu0 0.0
        %734 = vmatprep.subr.mxu0 0.0
        %735 = vmatpush1.msra.mxu0 0.0
        %736 = vmatprep.subr.mxu0 0.0
        %737 = vmatpush1.msra.mxu0 0.0
        %738 = vmatprep.subr.mxu0 0.0
        %739 = vmatpush1.msra.mxu0 0.0
        %740 = vmatprep.subr.mxu0 0.0
        %741 = vmatpush1.msra.mxu0 0.0
        %742 = vmatprep.subr.mxu0 0.0
        %743 = vmatpush1.msra.mxu0 0.0
        %744 = vmatprep.subr.mxu0 0.0
        %745 = vmatpush1.msra.mxu0 0.0
        %746 = vmatprep.mubr.f32.mxu0 0.0
        %747 = vmatmul.mubr.f32.gmra.mrb[0].mxu0 %v678
        %v748 = vpop.f32.mrb[0].mxu0
        %v749 = vadd.f32 %v670, %v748
        %v750 = vpop.f32.mrb[0].mxu0
        %751 = vmatprep.mubr.f32.mxu0 0.0
        %752 = vmatmul.mubr.f32.gmra.mrb[0].mxu0 %v680
        %v753 = vpop.f32.mrb[0].mxu0
        %v754 = vadd.f32 %v670, %v753
        %v755 = vpop.f32.mrb[0].mxu0
        %756 = vdwg.mxu0
        %v757 = vmax.f32 %v749, 0.0
        %v758 = vmax.f32 %v754, 0.0
        %v761 = vcombine.high %v757, %v757
        %v762 = vcombine.high %v758, %v758
        %s765 = scalar_lea.vmem [#allocation3], 8
        %vm766 = vcmask 27648
        %767 = vst.msk [vmem:[%s765 + $0x1] sm:$0xf] %vm766, %v757
        %768 = vst.msk [vmem:[%s765 + $0x9] sm:$0xf] %vm766, %v761
        %769 = vst.msk [vmem:[%s765 + $0x11] sm:$0xf] %vm766, %v758
        %770 = vst.msk [vmem:[%s765 + $0x19] sm:$0xf] %vm766, %v762
        %v771 = vld [vmem:[#allocation3] sm:$0xf]
        %v772 = vld [vmem:[#allocation3 + $0x8] sm:$0xf]
        %v773 = vld [vmem:[#allocation3 + $0x10] sm:$0xf]
        %v774 = vld [vmem:[#allocation3 + $0x18] sm:$0xf]
        %v775 = vld [vmem:[#allocation3 + $0x1] sm:$0xf]
        %v776 = vld [vmem:[#allocation3 + $0x9] sm:$0xf]
        %v777 = vld [vmem:[#allocation3 + $0x11] sm:$0xf]
        %v778 = vld [vmem:[#allocation3 + $0x19] sm:$0xf]
        %v779 = vld [vmem:[#allocation3 + $0x2] sm:$0xf]
        %v780 = vld [vmem:[#allocation3 + $0xa] sm:$0xf]
        %v781 = vld [vmem:[#allocation3 + $0x12] sm:$0xf]
        %v782 = vld [vmem:[#allocation3 + $0x1a] sm:$0xf]
        %v783 = vld [vmem:[%s765] sm:$0xf]
        %v784 = vld [vmem:[%s765 + $0x8] sm:$0xf]
        %v785 = vld [vmem:[%s765 + $0x10] sm:$0xf]
        %v786 = vld [vmem:[%s765 + $0x18] sm:$0xf]
        %v787 = vld [vmem:[%s765 + $0x1] sm:$0xf]
        %v788 = vld [vmem:[%s765 + $0x9] sm:$0xf]
        %v789 = vld [vmem:[%s765 + $0x11] sm:$0xf]
        %v790 = vld [vmem:[%s765 + $0x19] sm:$0xf]
        %v791 = vld [vmem:[%s765 + $0x2] sm:$0xf]
        %v792 = vld [vmem:[%s765 + $0xa] sm:$0xf]
        %v793 = vld [vmem:[%s765 + $0x12] sm:$0xf]
        %v794 = vld [vmem:[%s765 + $0x1a] sm:$0xf]
        %s795 = scalar_lea.vmem [#allocation3], 16
        %v796 = vld [vmem:[%s795] sm:$0xf]
        %v797 = vld [vmem:[%s795 + $0x8] sm:$0xf]
        %v798 = vld [vmem:[%s795 + $0x10] sm:$0xf]
        %v799 = vld [vmem:[%s795 + $0x18] sm:$0xf]
        %v800 = vld [vmem:[%s795 + $0x1] sm:$0xf]
        %v801 = vld [vmem:[%s795 + $0x9] sm:$0xf]
        %v802 = vld [vmem:[%s795 + $0x11] sm:$0xf]
        %v803 = vld [vmem:[%s795 + $0x19] sm:$0xf]
        %v804 = vld [vmem:[%s795 + $0x2] sm:$0xf]
        %v805 = vld [vmem:[%s795 + $0xa] sm:$0xf]
        %v806 = vld [vmem:[%s795 + $0x12] sm:$0xf]
        %v807 = vld [vmem:[%s795 + $0x1a] sm:$0xf]
        %812 = vrot.lane.b32.xlu0 %v775, 4
        %v813 = vpop.permute.xlu0 %812
        %814 = vrot.lane.b32.xlu0 %v776, 4
        %v815 = vpop.permute.xlu0 %814
        %816 = vrot.lane.b32.xlu0 %v777, 4
        %v817 = vpop.permute.xlu0 %816
        %818 = vrot.lane.b32.xlu0 %v778, 4
        %v819 = vpop.permute.xlu0 %818
        %828 = vrot.lane.b32.xlu0 %v779, 8
        %v829 = vpop.permute.xlu0 %828
        %830 = vrot.lane.b32.xlu0 %v780, 8
        %v831 = vpop.permute.xlu0 %830
        %832 = vrot.lane.b32.xlu0 %v781, 8
        %v833 = vpop.permute.xlu0 %832
        %834 = vrot.lane.b32.xlu0 %v782, 8
        %v835 = vpop.permute.xlu0 %834
        %844 = vrot.lane.b32.xlu0 %v783, 12
        %v845 = vpop.permute.xlu0 %844
        %846 = vrot.lane.b32.xlu0 %v784, 12
        %v847 = vpop.permute.xlu0 %846
        %848 = vrot.lane.b32.xlu0 %v785, 12
        %v849 = vpop.permute.xlu0 %848
        %850 = vrot.lane.b32.xlu0 %v786, 12
        %v851 = vpop.permute.xlu0 %850
        %860 = vrot.lane.b32.xlu0 %v787, 16
        %v861 = vpop.permute.xlu0 %860
        %862 = vrot.lane.b32.xlu0 %v788, 16
        %v863 = vpop.permute.xlu0 %862
        %864 = vrot.lane.b32.xlu0 %v789, 16
        %v865 = vpop.permute.xlu0 %864
        %866 = vrot.lane.b32.xlu0 %v790, 16
        %v867 = vpop.permute.xlu0 %866
        %876 = vrot.lane.b32.xlu0 %v791, 20
        %v877 = vpop.permute.xlu0 %876
        %878 = vrot.lane.b32.xlu0 %v792, 20
        %v879 = vpop.permute.xlu0 %878
        %880 = vrot.lane.b32.xlu0 %v793, 20
        %v881 = vpop.permute.xlu0 %880
        %882 = vrot.lane.b32.xlu0 %v794, 20
        %v883 = vpop.permute.xlu0 %882
        %892 = vrot.lane.b32.xlu0 %v796, 24
        %v893 = vpop.permute.xlu0 %892
        %894 = vrot.lane.b32.xlu0 %v797, 24
        %v895 = vpop.permute.xlu0 %894
        %896 = vrot.lane.b32.xlu0 %v798, 24
        %v897 = vpop.permute.xlu0 %896
        %898 = vrot.lane.b32.xlu0 %v799, 24
        %v899 = vpop.permute.xlu0 %898
        %908 = vrot.lane.b32.xlu0 %v800, 28
        %v909 = vpop.permute.xlu0 %908
        %910 = vrot.lane.b32.xlu0 %v801, 28
        %v911 = vpop.permute.xlu0 %910
        %912 = vrot.lane.b32.xlu0 %v802, 28
        %v913 = vpop.permute.xlu0 %912
        %914 = vrot.lane.b32.xlu0 %v803, 28
        %v915 = vpop.permute.xlu0 %914
        %924 = vrot.lane.b32.xlu0 %v804, 32
        %v925 = vpop.permute.xlu0 %924
        %926 = vrot.lane.b32.xlu0 %v805, 32
        %v927 = vpop.permute.xlu0 %926
        %928 = vrot.lane.b32.xlu0 %v806, 32
        %v929 = vpop.permute.xlu0 %928
        %930 = vrot.lane.b32.xlu0 %v807, 32
        %v931 = vpop.permute.xlu0 %930
        %vm936 = vcmask 31744
        %v937 = vsel %vm936, %v771, %v813
        %v938 = vsel %vm936, %v772, %v815
        %v939 = vsel %vm936, %v773, %v817
        %v940 = vsel %vm936, %v774, %v819
        %vm941 = vcmask 64512
        %v942 = vsel %vm941, %v937, %v829
        %v943 = vsel %vm941, %v938, %v831
        %v944 = vsel %vm941, %v939, %v833
        %v945 = vsel %vm941, %v940, %v835
        %vm946 = vcmask 97280
        %v947 = vsel %vm946, %v942, %v845
        %v948 = vsel %vm946, %v943, %v847
        %v949 = vsel %vm946, %v944, %v849
        %v950 = vsel %vm946, %v945, %v851
        %v951 = vsel %vm642, %v947, %v861
        %v952 = vsel %vm642, %v948, %v863
        %v953 = vsel %vm642, %v949, %v865
        %v954 = vsel %vm642, %v950, %v867
        %vm955 = vcmask 162816
        %v956 = vsel %vm955, %v951, %v877
        %v957 = vsel %vm955, %v952, %v879
        %v958 = vsel %vm955, %v953, %v881
        %v959 = vsel %vm955, %v954, %v883
        %vm960 = vcmask 195584
        %v961 = vsel %vm960, %v956, %v893
        %v962 = vsel %vm960, %v957, %v895
        %v963 = vsel %vm960, %v958, %v897
        %v964 = vsel %vm960, %v959, %v899
        %vm965 = vcmask 228352
        %v966 = vsel %vm965, %v961, %v909
        %v967 = vsel %vm965, %v962, %v911
        %v968 = vsel %vm965, %v963, %v913
        %v969 = vsel %vm965, %v964, %v915
        %v970 = vsel %vm647, %v966, %v925
        %v971 = vsel %vm647, %v967, %v927
        %v972 = vsel %vm647, %v968, %v929
        %v973 = vsel %vm647, %v969, %v931
        %v974 = vld [vmem:[%s5] sm:$0xff]
        %v975 = vld [vmem:[%s5 + $0x8] sm:$0xff]
        %v976 = vld [vmem:[%s5 + $0x10] sm:$0xff]
        %v977 = vld [vmem:[%s5 + $0x18] sm:$0xff]
        %v978 = vld [vmem:[%s5 + $0x20] sm:$0xf]
        %v979 = vld [vmem:[%s6] sm:$0x1]
        %v981 = vlaneseq
        %v982 = vshrl.u32 %v981, 7
        %v983 = vsub.s32 0, %v982
        %v984 = vrot.slane %v979, %v983
        %v990 = vcombine.low %v970, %v971
        %v991 = vcombine.low %v972, %v973
        %vm992 = vcmask 293888
        %v993 = vsel %vm992, %v990, 0
        %v995 = vsel %vm992, %v991, 0
        %vm997 = vcmask 1043456
        %v999 = vsel %vm997, %v978, 0
        %1001 = vmatprep.subr.mxu0 0.0
        %1002 = vmatpush1.msra.mxu0 %v974
        %1003 = vmatprep.subr.mxu0 0.0
        %1004 = vmatpush1.msra.mxu0 %v975
        %1005 = vmatprep.subr.mxu0 0.0
        %1006 = vmatpush1.msra.mxu0 %v976
        %1007 = vmatprep.subr.mxu0 0.0
        %1008 = vmatpush1.msra.mxu0 %v977
        %1009 = vmatprep.subr.mxu0 0.0
        %1010 = vmatpush1.msra.mxu0 %v999
        %1011 = vmatprep.subr.mxu0 0.0
        %1012 = vmatpush1.msra.mxu0 0.0
        %1013 = vmatprep.subr.mxu0 0.0
        %1014 = vmatpush1.msra.mxu0 0.0
        %1015 = vmatprep.subr.mxu0 0.0
        %1016 = vmatpush1.msra.mxu0 0.0
        %1017 = vmatprep.subr.mxu0 0.0
        %1018 = vmatpush1.msra.mxu0 0.0
        %1019 = vmatprep.subr.mxu0 0.0
        %1020 = vmatpush1.msra.mxu0 0.0
        %1021 = vmatprep.subr.mxu0 0.0
        %1022 = vmatpush1.msra.mxu0 0.0
        %1023 = vmatprep.subr.mxu0 0.0
        %1024 = vmatpush1.msra.mxu0 0.0
        %1025 = vmatprep.subr.mxu0 0.0
        %1026 = vmatpush1.msra.mxu0 0.0
        %1027 = vmatprep.subr.mxu0 0.0
        %1028 = vmatpush1.msra.mxu0 0.0
        %1029 = vmatprep.subr.mxu0 0.0
        %1030 = vmatpush1.msra.mxu0 0.0
        %1031 = vmatprep.subr.mxu0 0.0
        %1032 = vmatpush1.msra.mxu0 0.0
        %1033 = vmatprep.subr.mxu0 0.0
        %1034 = vmatpush1.msra.mxu0 0.0
        %1035 = vmatprep.subr.mxu0 0.0
        %1036 = vmatpush1.msra.mxu0 0.0
        %1037 = vmatprep.subr.mxu0 0.0
        %1038 = vmatpush1.msra.mxu0 0.0
        %1039 = vmatprep.subr.mxu0 0.0
        %1040 = vmatpush1.msra.mxu0 0.0
        %1041 = vmatprep.subr.mxu0 0.0
        %1042 = vmatpush1.msra.mxu0 0.0
        %1043 = vmatprep.subr.mxu0 0.0
        %1044 = vmatpush1.msra.mxu0 0.0
        %1045 = vmatprep.subr.mxu0 0.0
        %1046 = vmatpush1.msra.mxu0 0.0
        %1047 = vmatprep.subr.mxu0 0.0
        %1048 = vmatpush1.msra.mxu0 0.0
        %1049 = vmatprep.subr.mxu0 0.0
        %1050 = vmatpush1.msra.mxu0 0.0
        %1051 = vmatprep.subr.mxu0 0.0
        %1052 = vmatpush1.msra.mxu0 0.0
        %1053 = vmatprep.subr.mxu0 0.0
        %1054 = vmatpush1.msra.mxu0 0.0
        %1055 = vmatprep.subr.mxu0 0.0
        %1056 = vmatpush1.msra.mxu0 0.0
        %1057 = vmatprep.subr.mxu0 0.0
        %1058 = vmatpush1.msra.mxu0 0.0
        %1059 = vmatprep.subr.mxu0 0.0
        %1060 = vmatpush1.msra.mxu0 0.0
        %1061 = vmatprep.subr.mxu0 0.0
        %1062 = vmatpush1.msra.mxu0 0.0
        %1063 = vmatprep.subr.mxu0 0.0
        %1064 = vmatpush1.msra.mxu0 0.0
        %1065 = vmatprep.mubr.f32.mxu0 0.0
        %1066 = vmatmul.mubr.f32.gmra.mrb[0].mxu0 %v993
        %v1067 = vpop.f32.mrb[0].mxu0
        %v1068 = vadd.f32 %v984, %v1067
        %v1069 = vpop.f32.mrb[0].mxu0
        %1070 = vmatprep.mubr.f32.mxu0 0.0
        %1071 = vmatmul.mubr.f32.gmra.mrb[0].mxu0 %v995
        %v1072 = vpop.f32.mrb[0].mxu0
        %v1073 = vadd.f32 %v984, %v1072
        %v1074 = vpop.f32.mrb[0].mxu0
        %1075 = vdwg.mxu0
        %v1076 = vmax.f32 %v1068, 0.0
        %v1077 = vmax.f32 %v1073, 0.0
        %v1078 = vadd.f32 %v1076, %v564
        %v1079 = vadd.f32 %v1077, %v565
        %v1082 = vcombine.high %v1078, %v1078
        %v1083 = vcombine.high %v1079, %v1079
        %s1086 = scalar_lea.vmem [#allocation4], 8
        %1087 = vst.msk [vmem:[%s1086 + $0x1] sm:$0xf] %vm573, %v1078
        %1088 = vst.msk [vmem:[%s1086 + $0x9] sm:$0xf] %vm573, %v1082
        %1089 = vst.msk [vmem:[%s1086 + $0x11] sm:$0xf] %vm573, %v1079
        %1090 = vst.msk [vmem:[%s1086 + $0x19] sm:$0xf] %vm573, %v1083
        %v1091 = vld [vmem:[#allocation4] sm:$0xf]
        %v1092 = vld [vmem:[#allocation4 + $0x8] sm:$0xf]
        %v1093 = vld [vmem:[#allocation4 + $0x10] sm:$0xf]
        %v1094 = vld [vmem:[#allocation4 + $0x18] sm:$0xf]
        %v1095 = vld [vmem:[#allocation4 + $0x1] sm:$0xf]
        %v1096 = vld [vmem:[#allocation4 + $0x9] sm:$0xf]
        %v1097 = vld [vmem:[#allocation4 + $0x11] sm:$0xf]
        %v1098 = vld [vmem:[#allocation4 + $0x19] sm:$0xf]
        %v1099 = vld [vmem:[#allocation4 + $0x2] sm:$0xf]
        %v1100 = vld [vmem:[#allocation4 + $0xa] sm:$0xf]
        %v1101 = vld [vmem:[#allocation4 + $0x12] sm:$0xf]
        %v1102 = vld [vmem:[#allocation4 + $0x1a] sm:$0xf]
        %v1103 = vld [vmem:[%s1086] sm:$0xf]
        %v1104 = vld [vmem:[%s1086 + $0x8] sm:$0xf]
        %v1105 = vld [vmem:[%s1086 + $0x10] sm:$0xf]
        %v1106 = vld [vmem:[%s1086 + $0x18] sm:$0xf]
        %v1107 = vld [vmem:[%s1086 + $0x1] sm:$0xf]
        %v1108 = vld [vmem:[%s1086 + $0x9] sm:$0xf]
        %v1109 = vld [vmem:[%s1086 + $0x11] sm:$0xf]
        %v1110 = vld [vmem:[%s1086 + $0x19] sm:$0xf]
        %v1111 = vld [vmem:[%s1086 + $0x2] sm:$0xf]
        %v1112 = vld [vmem:[%s1086 + $0xa] sm:$0xf]
        %v1113 = vld [vmem:[%s1086 + $0x12] sm:$0xf]
        %v1114 = vld [vmem:[%s1086 + $0x1a] sm:$0xf]
        %s1115 = scalar_lea.vmem [#allocation4], 16
        %v1116 = vld [vmem:[%s1115] sm:$0xf]
        %v1117 = vld [vmem:[%s1115 + $0x8] sm:$0xf]
        %v1118 = vld [vmem:[%s1115 + $0x10] sm:$0xf]
        %v1119 = vld [vmem:[%s1115 + $0x18] sm:$0xf]
        %v1120 = vld [vmem:[%s1115 + $0x1] sm:$0xf]
        %v1121 = vld [vmem:[%s1115 + $0x9] sm:$0xf]
        %v1122 = vld [vmem:[%s1115 + $0x11] sm:$0xf]
        %v1123 = vld [vmem:[%s1115 + $0x19] sm:$0xf]
        %v1124 = vld [vmem:[%s1115 + $0x2] sm:$0xf]
        %v1125 = vld [vmem:[%s1115 + $0xa] sm:$0xf]
        %v1126 = vld [vmem:[%s1115 + $0x12] sm:$0xf]
        %v1127 = vld [vmem:[%s1115 + $0x1a] sm:$0xf]
        %1132 = vrot.lane.b32.xlu0 %v1095, 16
        %v1133 = vpop.permute.xlu0 %1132
        %1134 = vrot.lane.b32.xlu0 %v1096, 16
        %v1135 = vpop.permute.xlu0 %1134
        %1136 = vrot.lane.b32.xlu0 %v1097, 16
        %v1137 = vpop.permute.xlu0 %1136
        %1138 = vrot.lane.b32.xlu0 %v1098, 16
        %v1139 = vpop.permute.xlu0 %1138
        %1148 = vrot.lane.b32.xlu0 %v1099, 32
        %v1149 = vpop.permute.xlu0 %1148
        %1150 = vrot.lane.b32.xlu0 %v1100, 32
        %v1151 = vpop.permute.xlu0 %1150
        %1152 = vrot.lane.b32.xlu0 %v1101, 32
        %v1153 = vpop.permute.xlu0 %1152
        %1154 = vrot.lane.b32.xlu0 %v1102, 32
        %v1155 = vpop.permute.xlu0 %1154
        %1164 = vrot.lane.b32.xlu0 %v1103, 48
        %v1165 = vpop.permute.xlu0 %1164
        %1166 = vrot.lane.b32.xlu0 %v1104, 48
        %v1167 = vpop.permute.xlu0 %1166
        %1168 = vrot.lane.b32.xlu0 %v1105, 48
        %v1169 = vpop.permute.xlu0 %1168
        %1170 = vrot.lane.b32.xlu0 %v1106, 48
        %v1171 = vpop.permute.xlu0 %1170
        %1180 = vrot.lane.b32.xlu0 %v1107, 64
        %v1181 = vpop.permute.xlu0 %1180
        %1182 = vrot.lane.b32.xlu0 %v1108, 64
        %v1183 = vpop.permute.xlu0 %1182
        %1184 = vrot.lane.b32.xlu0 %v1109, 64
        %v1185 = vpop.permute.xlu0 %1184
        %1186 = vrot.lane.b32.xlu0 %v1110, 64
        %v1187 = vpop.permute.xlu0 %1186
        %1196 = vrot.lane.b32.xlu0 %v1111, 80
        %v1197 = vpop.permute.xlu0 %1196
        %1198 = vrot.lane.b32.xlu0 %v1112, 80
        %v1199 = vpop.permute.xlu0 %1198
        %1200 = vrot.lane.b32.xlu0 %v1113, 80
        %v1201 = vpop.permute.xlu0 %1200
        %1202 = vrot.lane.b32.xlu0 %v1114, 80
        %v1203 = vpop.permute.xlu0 %1202
        %1212 = vrot.lane.b32.xlu0 %v1116, 96
        %v1213 = vpop.permute.xlu0 %1212
        %1214 = vrot.lane.b32.xlu0 %v1117, 96
        %v1215 = vpop.permute.xlu0 %1214
        %1216 = vrot.lane.b32.xlu0 %v1118, 96
        %v1217 = vpop.permute.xlu0 %1216
        %1218 = vrot.lane.b32.xlu0 %v1119, 96
        %v1219 = vpop.permute.xlu0 %1218
        %1228 = vrot.lane.b32.xlu0 %v1120, 112
        %v1229 = vpop.permute.xlu0 %1228
        %1230 = vrot.lane.b32.xlu0 %v1121, 112
        %v1231 = vpop.permute.xlu0 %1230
        %1232 = vrot.lane.b32.xlu0 %v1122, 112
        %v1233 = vpop.permute.xlu0 %1232
        %1234 = vrot.lane.b32.xlu0 %v1123, 112
        %v1235 = vpop.permute.xlu0 %1234
        %v1240 = vsel %vm642, %v1091, %v1133
        %v1241 = vsel %vm642, %v1092, %v1135
        %v1242 = vsel %vm642, %v1093, %v1137
        %v1243 = vsel %vm642, %v1094, %v1139
        %v1244 = vsel %vm647, %v1240, %v1149
        %v1245 = vsel %vm647, %v1241, %v1151
        %v1246 = vsel %vm647, %v1242, %v1153
        %v1247 = vsel %vm647, %v1243, %v1155
        %v1248 = vsel %vm652, %v1244, %v1165
        %v1249 = vsel %vm652, %v1245, %v1167
        %v1250 = vsel %vm652, %v1246, %v1169
        %v1251 = vsel %vm652, %v1247, %v1171
        %v1252 = vsel %vm421, %v1248, %v1181
        %v1253 = vsel %vm421, %v1249, %v1183
        %v1254 = vsel %vm421, %v1250, %v1185
        %v1255 = vsel %vm421, %v1251, %v1187
        %vm1256 = vcmask 654336
        %v1257 = vsel %vm1256, %v1252, %v1197
        %v1258 = vsel %vm1256, %v1253, %v1199
        %v1259 = vsel %vm1256, %v1254, %v1201
        %v1260 = vsel %vm1256, %v1255, %v1203
        %vm1261 = vcmask 785408
        %v1262 = vsel %vm1261, %v1257, %v1213
        %v1263 = vsel %vm1261, %v1258, %v1215
        %v1264 = vsel %vm1261, %v1259, %v1217
        %v1265 = vsel %vm1261, %v1260, %v1219
        %vm1266 = vcmask 916480
        %v1267 = vsel %vm1266, %v1262, %v1229
        %v1268 = vsel %vm1266, %v1263, %v1231
        %v1269 = vsel %vm1266, %v1264, %v1233
        %v1270 = vsel %vm1266, %v1265, %v1235
        %v1279 = vcombine.low %v1267, %v1124
        %v1280 = vcombine.low %v1268, %v1125
        %v1281 = vcombine.low %v1269, %v1126
        %v1282 = vcombine.low %v1270, %v1127
        %v1283 = vld [vmem:[%s7] sm:$0xff]
        %v1284 = vld [vmem:[%s7 + $0x8] sm:$0xff]
        %v1285 = vld [vmem:[%s7 + $0x10] sm:$0xff]
        %v1286 = vld [vmem:[%s7 + $0x18] sm:$0xff]
        %v1287 = vld [vmem:[%s7 + $0x20] sm:$0xff]
        %v1288 = vld [vmem:[%s7 + $0x28] sm:$0xff]
        %v1289 = vld [vmem:[%s7 + $0x30] sm:$0xff]
        %v1290 = vld [vmem:[%s7 + $0x38] sm:$0xff]
        %v1291 = vld [vmem:[%s7 + $0x40] sm:$0xff]
        %v1292 = vld [vmem:[%s7 + $0x48] sm:$0xff]
        %v1293 = vld [vmem:[%s7 + $0x50] sm:$0xff]
        %v1294 = vld [vmem:[%s7 + $0x58] sm:$0xff]
        %v1295 = vld [vmem:[%s7 + $0x60] sm:$0xff]
        %v1296 = vld [vmem:[%s7 + $0x68] sm:$0xff]
        %v1297 = vld [vmem:[%s7 + $0x70] sm:$0xff]
        %v1298 = vld [vmem:[%s7 + $0x78] sm:$0xff]
        %v1299 = vld [vmem:[%s7 + $0x80] sm:$0xff]
        %v1300 = vld [vmem:[%s7 + $0x88] sm:$0xff]
        %v1301 = vld [vmem:[%s8] sm:$0x1]
        %v1303 = vlaneseq
        %v1304 = vshrl.u32 %v1303, 7
        %v1305 = vsub.s32 0, %v1304
        %v1306 = vrot.slane %v1301, %v1305
        %v1308 = vcombine.low %v1279, %v1280
        %v1309 = vcombine.high %v1279, %v1280
        %v1310 = vcombine.low %v1281, %v1282
        %v1311 = vcombine.high %v1281, %v1282
        %v1314 = vsel %vm642, %v1309, 0
        %v1316 = vsel %vm642, %v1311, 0
        %1318 = vmatprep.subr.mxu0 0.0
        %1319 = vmatpush1.msra.mxu0 %v1283
        %1320 = vmatprep.subr.mxu0 0.0
        %1321 = vmatpush1.msra.mxu0 %v1284
        %1322 = vmatprep.subr.mxu0 0.0
        %1323 = vmatpush1.msra.mxu0 %v1285
        %1324 = vmatprep.subr.mxu0 0.0
        %1325 = vmatpush1.msra.mxu0 %v1286
        %1326 = vmatprep.subr.mxu0 0.0
        %1327 = vmatpush1.msra.mxu0 %v1287
        %1328 = vmatprep.subr.mxu0 0.0
        %1329 = vmatpush1.msra.mxu0 %v1288
        %1330 = vmatprep.subr.mxu0 0.0
        %1331 = vmatpush1.msra.mxu0 %v1289
        %1332 = vmatprep.subr.mxu0 0.0
        %1333 = vmatpush1.msra.mxu0 %v1290
        %1334 = vmatprep.subr.mxu0 0.0
        %1335 = vmatpush1.msra.mxu0 %v1291
        %1336 = vmatprep.subr.mxu0 0.0
        %1337 = vmatpush1.msra.mxu0 %v1292
        %1338 = vmatprep.subr.mxu0 0.0
        %1339 = vmatpush1.msra.mxu0 %v1293
        %1340 = vmatprep.subr.mxu0 0.0
        %1341 = vmatpush1.msra.mxu0 %v1294
        %1342 = vmatprep.subr.mxu0 0.0
        %1343 = vmatpush1.msra.mxu0 %v1295
        %1344 = vmatprep.subr.mxu0 0.0
        %1345 = vmatpush1.msra.mxu0 %v1296
        %1346 = vmatprep.subr.mxu0 0.0
        %1347 = vmatpush1.msra.mxu0 %v1297
        %1348 = vmatprep.subr.mxu0 0.0
        %1349 = vmatpush1.msra.mxu0 %v1298
        %1350 = vmatprep.subr.mxu0 0.0
        %1351 = vmatpush1.msra.mxu0 %v1299
        %1352 = vmatprep.subr.mxu0 0.0
        %1353 = vmatpush1.msra.mxu0 %v1300
        %1354 = vmatprep.subr.mxu0 0.0
        %1355 = vmatpush1.msra.mxu0 0.0
        %1356 = vmatprep.subr.mxu0 0.0
        %1357 = vmatpush1.msra.mxu0 0.0
        %1358 = vmatprep.subr.mxu0 0.0
        %1359 = vmatpush1.msra.mxu0 0.0
        %1360 = vmatprep.subr.mxu0 0.0
        %1361 = vmatpush1.msra.mxu0 0.0
        %1362 = vmatprep.subr.mxu0 0.0
        %1363 = vmatpush1.msra.mxu0 0.0
        %1364 = vmatprep.subr.mxu0 0.0
        %1365 = vmatpush1.msra.mxu0 0.0
        %1366 = vmatprep.subr.mxu0 0.0
        %1367 = vmatpush1.msra.mxu0 0.0
        %1368 = vmatprep.subr.mxu0 0.0
        %1369 = vmatpush1.msra.mxu0 0.0
        %1370 = vmatprep.subr.mxu0 0.0
        %1371 = vmatpush1.msra.mxu0 0.0
        %1372 = vmatprep.subr.mxu0 0.0
        %1373 = vmatpush1.msra.mxu0 0.0
        %1374 = vmatprep.subr.mxu0 0.0
        %1375 = vmatpush1.msra.mxu0 0.0
        %1376 = vmatprep.subr.mxu0 0.0
        %1377 = vmatpush1.msra.mxu0 0.0
        %1378 = vmatprep.subr.mxu0 0.0
        %1379 = vmatpush1.msra.mxu0 0.0
        %1380 = vmatprep.subr.mxu0 0.0
        %1381 = vmatpush1.msra.mxu0 0.0
        %1382 = vmatprep.mubr.f32.mxu0 %v1314
        %1383 = vmatmul.mubr.f32.gmra.mrb[0].mxu0 %v1308
        %v1384 = vpop.f32.mrb[0].mxu0
        %v1385 = vadd.f32 %v1306, %v1384
        %v1386 = vpop.f32.mrb[0].mxu0
        %1387 = vmatprep.mubr.f32.mxu0 %v1316
        %1388 = vmatmul.mubr.f32.gmra.mrb[0].mxu0 %v1310
        %v1389 = vpop.f32.mrb[0].mxu0
        %v1390 = vadd.f32 %v1306, %v1389
        %v1391 = vpop.f32.mrb[0].mxu0
        %1392 = vdwg.mxu0
        %v1393 = vmax.f32 %v1385, 0.0
        %v1394 = vmax.f32 %v1390, 0.0
        %v1397 = vcombine.high %v1393, %v1393
        %v1398 = vcombine.high %v1394, %v1394
        %v1401 = vld [vmem:[%s380 + $0x1] sm:$0xf]
        %v1402 = vld [vmem:[%s380 + $0x9] sm:$0xf]
        %v1403 = vld [vmem:[%s380 + $0x11] sm:$0xf]
        %v1404 = vld [vmem:[%s380 + $0x19] sm:$0xf]
        %v1405 = vadd.f32 %v1393, %v1401
        %v1406 = vadd.f32 %v1397, %v1402
        %v1407 = vadd.f32 %v1394, %v1403
        %v1408 = vadd.f32 %v1398, %v1404
        %vm1409 = vcmask 519168
        %1410 = vst.msk [vmem:[%s325] sm:$0xf] %vm1409, %v1405
        %1411 = vst.msk [vmem:[%s325 + $0x4] sm:$0xf] %vm1409, %v1406
        %1412 = vst.msk [vmem:[%s325 + $0x8] sm:$0xf] %vm1409, %v1407
        %1413 = vst.msk [vmem:[%s325 + $0xc] sm:$0xf] %vm1409, %v1408
        %s1414 = sand.u32 %s225, 1
        %s1415 = scalar_lea.sflag [#allocation6], %s1414
        %s1416 = sand.u32 %s225, 1
        %s1417 = smul.addr %s1416, 16
        %s1418 = scalar_lea.vmem [#allocation5], %s1417
        // Predicated region
        $region57: #{tpu_custom_call.1} parent=55 // pred_check
          %p1419 = pneg %p235
        $region58: #{tpu_custom_call.1} parent=55 // pred_check_branch
          %1421 = sbr.rel (%p1419) target = $region60
        $region59: #{tpu_custom_call.1} parent=55 // pred_region
          %s1423 = ssub.s32 256, 256
          %1424 = vsyncadd %s1415, %s1423
          %s1425 = smul.addr %s23, 4
          %s1426 = smul.addr %s1425, 64
          %s1427 = scalar_lea.hbm %s9, %s1426
          %s1428 = sshll.u32 %s1418, 4
          %s1429 = int_to_ptr.vmem [resolvable:$true] %s1428
          %1434 = dma.vmem_to_hbm [thread:$0]  %s1429, 256, %s1427, %s1415, 64, 64, 4
        $region60: #{tpu_custom_call.1} parent=55 // pred_fallthru
          _
      $region56: #{tpu_custom_call.1} parent=5 // pred_fallthru
        _
      %p1435 = scmp.le.s32.totalorder 2, %s18
      // Predicated region
      $region61: #{tpu_custom_call.1} parent=5 // pred_check
        %p1436 = pneg %p1435
      $region62: #{tpu_custom_call.1} parent=5 // pred_check_branch
        %1438 = sbr.rel (%p1436) target = $region64
      $region63: #{tpu_custom_call.1} parent=5 // pred_region
        %s1439 = ssub.s32 %s18, 2
        // Predicated region
        $region65: #{tpu_custom_call.1} parent=63 // pred_check
          %p1440 = pneg %p241
        $region66: #{tpu_custom_call.1} parent=63 // pred_check_branch
          %1442 = sbr.rel (%p1440) target = $region68
        $region67: #{tpu_custom_call.1} parent=63 // pred_region
          %s1443 = sand.u32 %s226, 1
          %s1444 = scalar_lea.sflag [#allocation6], %s1443
          %s1445 = sand.u32 %s226, 1
          %s1446 = smul.addr %s1445, 16
          %s1447 = scalar_lea.vmem [#allocation5], %s1446
          %1448 = dma.done %s1444, 256
        $region68: #{tpu_custom_call.1} parent=63 // pred_fallthru
          _
      $region64: #{tpu_custom_call.1} parent=5 // pred_fallthru
        _
    $region6: #{tpu_custom_call.1} parent=1 // loop_footer
      %s22 = sadd.s32 1, %s18
    $region7: #{tpu_custom_call.1} parent=1 // loop_footer_branch
      %17 = sbr.rel target = $region3
    $region8: #{tpu_custom_call.1} parent=1 // loop_exit
      _
    %1449 = vsyncpa [#allocation6], 1
    %s1450 = scalar_lea.sflag [#allocation6], 1
    %1451 = vsyncpa %s1450, 1

</llo_original>
